<compile_context>
chip_gen: v6e
topology: v6e:2x2x1
jax: 0.10.0
libtpu: 0.0.40
codegen_flags: <defaults>
</compile_context>

<pallas_src>
import functools

import numpy as np
import jax
import jax.numpy as jnp
from jax import lax
from jax.experimental import pallas as pl
from jax.experimental.pallas import tpu as pltpu

WIN_SIZE = 11
WIN_SIGMA = 1.5
DATA_RANGE = 1.0
K1 = 0.01
K2 = 0.03
_C1 = (K1 * DATA_RANGE) ** 2
_C2 = (K2 * DATA_RANGE) ** 2

# bf16 MXU operands with f32 accumulation (set to jnp.float32 for bit-closer
# numerics at lower MXU throughput). Dominant numerical deviation vs the f32
# reference; well within the test tolerance.
_FILTER_MATMUL_DTYPE = jnp.bfloat16


def _round_up(x, m):
    return (x + m - 1) // m * m


def _gaussian_window_np(win_size, sigma):
    coords = np.arange(win_size, dtype=np.float32) - win_size // 2
    g = np.exp(-(coords ** 2) / (2.0 * np.float32(sigma) ** 2)).astype(np.float32)
    return (g / g.sum()).astype(np.float32)


def _vmem_capacity_bytes():
    try:
        return int(pltpu.get_tpu_info().vmem_capacity_bytes)
    except Exception:
        return 64 * 2 ** 20  # conservative fallback (v7x per-core VMEM)


def _loss_kernel(p_ref, t_ref, awt_ref, mask_ref, out_ref, lhs_ref, *, gauss, Hop):
    """One grid step: B planes of shape (H, W) -> (mse partial, ssim partial)."""
    x = p_ref[...].astype(jnp.float32)   # (B, H, W)
    y = t_ref[...].astype(jnp.float32)
    B, H, W = x.shape
    Hp = Hop + WIN_SIZE - 1
    BH = B * Hop
    Wop = awt_ref.shape[1]

    # ---- MSE partial sum (zero-padded planes contribute 0) ------------------
    d = x - y
    mse_part = jnp.sum(d * d)

    # ---- in-VMEM row pad to Hp (padded filter rows are masked below) --------
    if Hp > H:
        zpad = jnp.zeros((B, Hp - H, W), jnp.float32)
        xp = jnp.concatenate([x, zpad], axis=1)
        yp = jnp.concatenate([y, zpad], axis=1)
    else:
        xp, yp = x, y

    c = WIN_SIZE // 2  # 5

    # ---- vertical (H) Gaussian filter: symmetric-folded shift-and-accumulate
    # TODO(synk): evaluate moving this onto the MXU too (band matmul over H);
    # the VPU is the binding unit while the MXU has large slack.
    def hfilt(z):
        acc = gauss[c] * z[:, c:c + Hop, :]
        for k in range(c):
            m = WIN_SIZE - 1 - k
            acc = acc + gauss[k] * (z[:, k:k + Hop, :] + z[:, m:m + Hop, :])
        return acc                                    # (B, Hop, W) f32

    def store(q, val):
        lhs_ref[q * BH:(q + 1) * BH, :] = (
            val.reshape(BH, W).astype(_FILTER_MATMUL_DTYPE))

    # Written one at a time into the bf16 slab: no 5-way f32 concat, lower
    # peak VMEM, and each f32 intermediate dies right after its store.
    store(0, hfilt(xp))
    store(1, hfilt(yp))
    store(2, hfilt(xp * xp))
    store(3, hfilt(yp * yp))
    store(4, hfilt(xp * yp))

    # ---- horizontal (W) filter: one fused, lane-padded MXU matmul -----------
    r = jnp.dot(lhs_ref[...], awt_ref[...],
                preferred_element_type=jnp.float32)   # (5*BH, Wop) f32

    mu1 = r[0 * BH:1 * BH]
    mu2 = r[1 * BH:2 * BH]
    sxx = r[2 * BH:3 * BH]
    syy = r[3 * BH:4 * BH]
    sxy = r[4 * BH:5 * BH]

    mu1mu2 = mu1 * mu2
    mu1sq = mu1 * mu1
    mu2sq = mu2 * mu2
    num = (2.0 * mu1mu2 + _C1) * (2.0 * (sxy - mu1mu2) + _C2)
    den = (mu1sq + mu2sq + _C1) * ((sxx - mu1sq) + (syy - mu2sq) + _C2)

    inv = pl.reciprocal(den, approx=True)             # EUP slot, not VPU
    inv = inv * (2.0 - den * inv)                     # one Newton step (~1e-6 rel)
    ssim_map = (num * inv).reshape(B, Hop, Wop)

    # Precomputed 0/1 valid-region mask (rows < Ho, cols < Wo); broadcast over
    # the plane dim is free. All-zero (padded) planes give ssim == 1 everywhere
    # and are corrected analytically in the wrapper.
    ssim_part = jnp.sum(ssim_map * mask_ref[...][None, :, :])

    # Tile-aligned per-block partials: row 0, lane 0 = MSE sum, lane 1 = SSIM sum.
    sub = lax.broadcasted_iota(jnp.int32, (1, 8, 128), 1)
    lane = lax.broadcasted_iota(jnp.int32, (1, 8, 128), 2)
    out_ref[...] = jnp.where((sub == 0) & (lane == 0), mse_part,
                             jnp.where((sub == 0) & (lane == 1), ssim_part, 0.0))


@functools.partial(jax.jit, static_argnames=("alpha",))
def combined_mse_ssim_loss(pred, target, alpha=0.8):
    """pred, target: (N, C, H, W) arrays with values in [0, 1]."""
    N, C, H, W = pred.shape
    Ho = H - WIN_SIZE + 1
    Wo = W - WIN_SIZE + 1
    assert Ho > 0 and Wo > 0, "spatial dims must be >= 11 for SSIM window"

    Hop = _round_up(Ho, 8)          # sublane-aligned filtered rows
    Wop = _round_up(Wo, 128)        # lane-aligned filtered cols
    Hp = Hop + WIN_SIZE - 1         # rows needed so every 11-tap window is in range
    P = N * C

    g = _gaussian_window_np(WIN_SIZE, WIN_SIGMA)

    # Pre-transposed, lane-padded band matrix for the W-direction filter
    # (columns >= Wo are zero -> ssim == 1 there, masked out below).
    awt_np = np.zeros((W, Wop), dtype=np.float32)
    for j in range(Wo):
        awt_np[j:j + WIN_SIZE, j] = g
    awt = jnp.asarray(awt_np, dtype=_FILTER_MATMUL_DTYPE)
    # TODO(synk): for large W, switch to banded 128-wide column-strip matmuls
    # (K = 138 per strip) to cut wasted MXU flops and shrink AwT VMEM.

    mask_np = np.zeros((Hop, Wop), dtype=np.float32)
    mask_np[:Ho, :Wo] = 1.0
    mask = jnp.asarray(mask_np)

    # ---- generation-aware VMEM budget and B (planes per grid step) ----------
    vmem_cap = _vmem_capacity_bytes()
    per_plane_bytes = (16 * H * W          # 2 inputs x 2 DMA buffers (f32)
                       + 16 * Hp * W       # padded x/y + product temporaries (f32)
                       + 18 * Hop * W      # H-filter temporaries + bf16 lhs slab
                       + 52 * Hop * Wop)   # W-matmul result + SSIM temporaries
    fixed_bytes = 2 * (W * Wop * 2 + Hop * Wop * 4)   # AwT + mask (double-buffered)
    budget = int(0.70 * vmem_cap)
    B = int(max(1, min(P, (budget - fixed_bytes) // max(per_plane_bytes, 1))))
    if P >= 2:
        B = min(B, -(-P // 2))      # keep >= 2 grid blocks (v7x dual TensorCore)
    # Prefer a B that divides P (avoids an HBM plane-padding pass); accept it
    # only if it is within 2x of the budgeted B.
    b_div = next(b for b in range(B, 0, -1) if P % b == 0)
    if 2 * b_div >= B:
        B = b_div
    num_blocks = -(-P // B)
    Pp = num_blocks * B
    # TODO(synk): row-strip tiling with a 10-row halo for planes too large to
    # fit even B=1 whole-plane blocks under the v7x 64 MiB VMEM budget.

    p = pred.reshape(P, H, W)
    t = target.reshape(P, H, W)
    if Pp > P:
        # Padded zero planes contribute 0 to the MSE sum and exactly Ho*Wo each
        # to the SSIM sum (ssim == 1 on all-zero inputs); corrected analytically.
        p = jnp.pad(p, ((0, Pp - P), (0, 0), (0, 0)))
        t = jnp.pad(t, ((0, Pp - P), (0, 0), (0, 0)))

    kernel = functools.partial(_loss_kernel,
                               gauss=tuple(float(v) for v in g), Hop=Hop)

    flops_per_plane = (3 * H * W                       # mse
                       + 3 * Hp * W                    # products
                       + 5 * 16 * Hop * W              # folded H filter (VPU)
                       + 2 * 5 * Hop * W * Wop         # fused W matmul (MXU)
                       + 25 * Hop * Wop)               # ssim map
    cost = pl.CostEstimate(
        flops=int(Pp * flops_per_plane),
        transcendentals=int(Pp * Hop * Wop),
        bytes_accessed=int(2 * Pp * H * W * pred.dtype.itemsize
                           + W * Wop * 2 + Hop * Wop * 4
                           + num_blocks * 8 * 128 * 4))

    partials = pl.pallas_call(
        kernel,
        out_shape=jax.ShapeDtypeStruct((num_blocks, 8, 128), jnp.float32),
        grid_spec=pltpu.PrefetchScalarGridSpec(
            num_scalar_prefetch=0,
            grid=(num_blocks,),
            in_specs=[
                pl.BlockSpec((B, H, W), lambda i: (i, 0, 0)),
                pl.BlockSpec((B, H, W), lambda i: (i, 0, 0)),
                pl.BlockSpec((W, Wop), lambda i: (0, 0)),
                pl.BlockSpec((Hop, Wop), lambda i: (0, 0)),
            ],
            out_specs=pl.BlockSpec((1, 8, 128), lambda i: (i, 0, 0)),
            scratch_shapes=[pltpu.VMEM((5 * B * Hop, W), _FILTER_MATMUL_DTYPE)],
        ),
        compiler_params=pltpu.CompilerParams(
            dimension_semantics=("parallel",),
            vmem_limit_bytes=int(0.85 * vmem_cap),
        ),
        cost_estimate=cost,
    )(p, t, awt, mask)

    mse_sum = jnp.sum(partials[:, 0, 0])
    ssim_sum = jnp.sum(partials[:, 0, 1]) - jnp.float32((Pp - P) * Ho * Wo)
    mse = mse_sum / jnp.float32(P * H * W)
    ssim_val = ssim_sum / jnp.float32(P * Ho * Wo)
    return alpha * mse + (1.0 - alpha) * (1.0 - ssim_val)


def _reference_loss(pred, target, alpha=0.8):
    """Pure-JAX f32 reference (same semantics as the PyTorch module)."""
    N, C, H, W = pred.shape
    Ho = H - WIN_SIZE + 1
    Wo = W - WIN_SIZE + 1
    g = jnp.asarray(_gaussian_window_np(WIN_SIZE, WIN_SIGMA))
    x = pred.reshape(N * C, H, W).astype(jnp.float32)
    y = target.reshape(N * C, H, W).astype(jnp.float32)

    def filt(z):
        zh = sum(g[k] * z[:, k:k + Ho, :] for k in range(WIN_SIZE))
        return sum(g[k] * zh[:, :, k:k + Wo] for k in range(WIN_SIZE))

    mu1, mu2 = filt(x), filt(y)
    sxx, syy, sxy = filt(x * x), filt(y * y), filt(x * y)
    s1 = sxx - mu1 * mu1
    s2 = syy - mu2 * mu2
    s12 = sxy - mu1 * mu2
    ssim_map = (((2.0 * mu1 * mu2 + _C1) * (2.0 * s12 + _C2))
                / ((mu1 * mu1 + mu2 * mu2 + _C1) * (s1 + s2 + _C2)))
    mse = jnp.mean((x - y) ** 2)
    return alpha * mse + (1.0 - alpha) * (1.0 - jnp.mean(ssim_map))


if __name__ == "__main__":
    key = jax.random.PRNGKey(0)
    kp, kt = jax.random.split(key)
    pred = jax.random.uniform(kp, (2, 4, 16, 16), dtype=jnp.float32)
    target = jax.random.uniform(kt, (2, 4, 16, 16), dtype=jnp.float32)

    loss = combined_mse_ssim_loss(pred, target, alpha=0.8)
    jax.block_until_ready(loss)

    ref = _reference_loss(pred, target, alpha=0.8)
    assert bool(jnp.isfinite(loss)), "kernel produced non-finite loss"
    assert abs(float(loss) - float(ref)) < 1e-2, (float(loss), float(ref))

    print("KERNEL_OK")
</pallas_src>

<mosaic_0001>
module attributes {stable_mosaic.version = 11 : i64} {
  func.func @_loss_kernel(%arg0: i32, %arg1: memref<4x16x16xf32, #tpu.memory_space<vmem>>, %arg2: memref<4x16x16xf32, #tpu.memory_space<vmem>>, %arg3: memref<16x128xbf16, #tpu.memory_space<vmem>>, %arg4: memref<8x128xf32, #tpu.memory_space<vmem>>, %arg5: memref<1x8x128xf32, #tpu.memory_space<vmem>>, %arg6: memref<160x16xbf16, #tpu.memory_space<vmem>>) attributes {dimension_semantics = [#tpu.dimension_semantics<parallel>], iteration_bounds = array<i64: 2>, scalar_prefetch = 0 : i64, scratch_operands = 1 : i64, tpu.core_type = #tpu.core_type<tc>, window_params = [{transform_indices = @transform_0, window_bounds = array<i64: 4, 16, 16>}, {transform_indices = @transform_1, window_bounds = array<i64: 4, 16, 16>}, {pipeline_mode = #tpu.pipeline_mode<synchronous>, transform_indices = @transform_2, window_bounds = array<i64: 16, 128>}, {pipeline_mode = #tpu.pipeline_mode<synchronous>, transform_indices = @transform_3, window_bounds = array<i64: 8, 128>}, {transform_indices = @transform_4, window_bounds = array<i64: 1, 8, 128>}]} {
    %c0 = arith.constant 0 : index
    %c0_0 = arith.constant 0 : index
    %c0_1 = arith.constant 0 : index
    %0 = vector.load %arg1[%c0, %c0_0, %c0_1] : memref<4x16x16xf32, #tpu.memory_space<vmem>>, vector<4x16x16xf32>
    %c0_2 = arith.constant 0 : index
    %c0_3 = arith.constant 0 : index
    %c0_4 = arith.constant 0 : index
    %1 = vector.load %arg2[%c0_2, %c0_3, %c0_4] : memref<4x16x16xf32, #tpu.memory_space<vmem>>, vector<4x16x16xf32>
    %2 = arith.subf %0, %1 : vector<4x16x16xf32>
    %3 = arith.mulf %2, %2 : vector<4x16x16xf32>
    %4 = vector.shape_cast %3 : vector<4x16x16xf32> to vector<1x4x16x16xf32>
    %cst = arith.constant dense<0.000000e+00> : vector<1xf32>
    %5 = vector.multi_reduction <add>, %4, %cst [1, 2, 3] : vector<1x4x16x16xf32> to vector<1xf32>
    %6 = vector.shape_cast %5 : vector<1xf32> to vector<1x1x1x1xf32>
    %7 = vector.extract %6[0, 0, 0, 0] : f32 from vector<1x1x1x1xf32>
    %cst_5 = arith.constant 0.000000e+00 : f32
    %8 = vector.broadcast %cst_5 : f32 to vector<4x2x16xf32>
    %9 = tpu.concatenate %0, %8 in 1 : vector<4x16x16xf32>, vector<4x2x16xf32> -> vector<4x18x16xf32>
    %10 = tpu.concatenate %1, %8 in 1 : vector<4x16x16xf32>, vector<4x2x16xf32> -> vector<4x18x16xf32>
    %11 = vector.extract_strided_slice %9 {offsets = [0, 5, 0], sizes = [4, 8, 16], strides = [1, 1, 1]} : vector<4x18x16xf32> to vector<4x8x16xf32>
    %cst_6 = arith.constant 0.266011745 : f32
    %12 = vector.broadcast %cst_6 : f32 to vector<4x8x16xf32>
    %13 = arith.mulf %12, %11 : vector<4x8x16xf32>
    %14 = vector.extract_strided_slice %9 {offsets = [0, 0, 0], sizes = [4, 8, 16], strides = [1, 1, 1]} : vector<4x18x16xf32> to vector<4x8x16xf32>
    %15 = vector.extract_strided_slice %9 {offsets = [0, 10, 0], sizes = [4, 8, 16], strides = [1, 1, 1]} : vector<4x18x16xf32> to vector<4x8x16xf32>
    %16 = arith.addf %14, %15 : vector<4x8x16xf32>
    %cst_7 = arith.constant 0.00102838036 : f32
    %17 = vector.broadcast %cst_7 : f32 to vector<4x8x16xf32>
    %18 = arith.mulf %17, %16 : vector<4x8x16xf32>
    %19 = arith.addf %13, %18 : vector<4x8x16xf32>
    %20 = vector.extract_strided_slice %9 {offsets = [0, 1, 0], sizes = [4, 8, 16], strides = [1, 1, 1]} : vector<4x18x16xf32> to vector<4x8x16xf32>
    %21 = vector.extract_strided_slice %9 {offsets = [0, 9, 0], sizes = [4, 8, 16], strides = [1, 1, 1]} : vector<4x18x16xf32> to vector<4x8x16xf32>
    %22 = arith.addf %20, %21 : vector<4x8x16xf32>
    %cst_8 = arith.constant 0.00759875868 : f32
    %23 = vector.broadcast %cst_8 : f32 to vector<4x8x16xf32>
    %24 = arith.mulf %23, %22 : vector<4x8x16xf32>
    %25 = arith.addf %19, %24 : vector<4x8x16xf32>
    %26 = vector.extract_strided_slice %9 {offsets = [0, 2, 0], sizes = [4, 8, 16], strides = [1, 1, 1]} : vector<4x18x16xf32> to vector<4x8x16xf32>
    %27 = vector.extract_strided_slice %9 {offsets = [0, 8, 0], sizes = [4, 8, 16], strides = [1, 1, 1]} : vector<4x18x16xf32> to vector<4x8x16xf32>
    %28 = arith.addf %26, %27 : vector<4x8x16xf32>
    %cst_9 = arith.constant 0.0360007733 : f32
    %29 = vector.broadcast %cst_9 : f32 to vector<4x8x16xf32>
    %30 = arith.mulf %29, %28 : vector<4x8x16xf32>
    %31 = arith.addf %25, %30 : vector<4x8x16xf32>
    %32 = vector.extract_strided_slice %9 {offsets = [0, 3, 0], sizes = [4, 8, 16], strides = [1, 1, 1]} : vector<4x18x16xf32> to vector<4x8x16xf32>
    %33 = vector.extract_strided_slice %9 {offsets = [0, 7, 0], sizes = [4, 8, 16], strides = [1, 1, 1]} : vector<4x18x16xf32> to vector<4x8x16xf32>
    %34 = arith.addf %32, %33 : vector<4x8x16xf32>
    %cst_10 = arith.constant 0.109360702 : f32
    %35 = vector.broadcast %cst_10 : f32 to vector<4x8x16xf32>
    %36 = arith.mulf %35, %34 : vector<4x8x16xf32>
    %37 = arith.addf %31, %36 : vector<4x8x16xf32>
    %38 = vector.extract_strided_slice %9 {offsets = [0, 4, 0], sizes = [4, 8, 16], strides = [1, 1, 1]} : vector<4x18x16xf32> to vector<4x8x16xf32>
    %39 = vector.extract_strided_slice %9 {offsets = [0, 6, 0], sizes = [4, 8, 16], strides = [1, 1, 1]} : vector<4x18x16xf32> to vector<4x8x16xf32>
    %40 = arith.addf %38, %39 : vector<4x8x16xf32>
    %cst_11 = arith.constant 0.213005543 : f32
    %41 = vector.broadcast %cst_11 : f32 to vector<4x8x16xf32>
    %42 = arith.mulf %41, %40 : vector<4x8x16xf32>
    %43 = arith.addf %37, %42 : vector<4x8x16xf32>
    %44 = vector.shape_cast %43 : vector<4x8x16xf32> to vector<32x16xf32>
    %45 = arith.truncf %44 : vector<32x16xf32> to vector<32x16xbf16>
    %c0_12 = arith.constant 0 : index
    %c0_13 = arith.constant 0 : index
    %46 = vector.load %arg6[%c0_12, %c0_13] : memref<160x16xbf16, #tpu.memory_space<vmem>>, vector<32x16xbf16>
    tpu.vector_store %arg6[%c0_12, %c0_13], %45 {strides = array<i32>} : memref<160x16xbf16, #tpu.memory_space<vmem>>, vector<32x16xbf16>,
    %47 = vector.extract_strided_slice %10 {offsets = [0, 5, 0], sizes = [4, 8, 16], strides = [1, 1, 1]} : vector<4x18x16xf32> to vector<4x8x16xf32>
    %cst_14 = arith.constant 0.266011745 : f32
    %48 = vector.broadcast %cst_14 : f32 to vector<4x8x16xf32>
    %49 = arith.mulf %48, %47 : vector<4x8x16xf32>
    %50 = vector.extract_strided_slice %10 {offsets = [0, 0, 0], sizes = [4, 8, 16], strides = [1, 1, 1]} : vector<4x18x16xf32> to vector<4x8x16xf32>
    %51 = vector.extract_strided_slice %10 {offsets = [0, 10, 0], sizes = [4, 8, 16], strides = [1, 1, 1]} : vector<4x18x16xf32> to vector<4x8x16xf32>
    %52 = arith.addf %50, %51 : vector<4x8x16xf32>
    %cst_15 = arith.constant 0.00102838036 : f32
    %53 = vector.broadcast %cst_15 : f32 to vector<4x8x16xf32>
    %54 = arith.mulf %53, %52 : vector<4x8x16xf32>
    %55 = arith.addf %49, %54 : vector<4x8x16xf32>
    %56 = vector.extract_strided_slice %10 {offsets = [0, 1, 0], sizes = [4, 8, 16], strides = [1, 1, 1]} : vector<4x18x16xf32> to vector<4x8x16xf32>
    %57 = vector.extract_strided_slice %10 {offsets = [0, 9, 0], sizes = [4, 8, 16], strides = [1, 1, 1]} : vector<4x18x16xf32> to vector<4x8x16xf32>
    %58 = arith.addf %56, %57 : vector<4x8x16xf32>
    %cst_16 = arith.constant 0.00759875868 : f32
    %59 = vector.broadcast %cst_16 : f32 to vector<4x8x16xf32>
    %60 = arith.mulf %59, %58 : vector<4x8x16xf32>
    %61 = arith.addf %55, %60 : vector<4x8x16xf32>
    %62 = vector.extract_strided_slice %10 {offsets = [0, 2, 0], sizes = [4, 8, 16], strides = [1, 1, 1]} : vector<4x18x16xf32> to vector<4x8x16xf32>
    %63 = vector.extract_strided_slice %10 {offsets = [0, 8, 0], sizes = [4, 8, 16], strides = [1, 1, 1]} : vector<4x18x16xf32> to vector<4x8x16xf32>
    %64 = arith.addf %62, %63 : vector<4x8x16xf32>
    %cst_17 = arith.constant 0.0360007733 : f32
    %65 = vector.broadcast %cst_17 : f32 to vector<4x8x16xf32>
    %66 = arith.mulf %65, %64 : vector<4x8x16xf32>
    %67 = arith.addf %61, %66 : vector<4x8x16xf32>
    %68 = vector.extract_strided_slice %10 {offsets = [0, 3, 0], sizes = [4, 8, 16], strides = [1, 1, 1]} : vector<4x18x16xf32> to vector<4x8x16xf32>
    %69 = vector.extract_strided_slice %10 {offsets = [0, 7, 0], sizes = [4, 8, 16], strides = [1, 1, 1]} : vector<4x18x16xf32> to vector<4x8x16xf32>
    %70 = arith.addf %68, %69 : vector<4x8x16xf32>
    %cst_18 = arith.constant 0.109360702 : f32
    %71 = vector.broadcast %cst_18 : f32 to vector<4x8x16xf32>
    %72 = arith.mulf %71, %70 : vector<4x8x16xf32>
    %73 = arith.addf %67, %72 : vector<4x8x16xf32>
    %74 = vector.extract_strided_slice %10 {offsets = [0, 4, 0], sizes = [4, 8, 16], strides = [1, 1, 1]} : vector<4x18x16xf32> to vector<4x8x16xf32>
    %75 = vector.extract_strided_slice %10 {offsets = [0, 6, 0], sizes = [4, 8, 16], strides = [1, 1, 1]} : vector<4x18x16xf32> to vector<4x8x16xf32>
    %76 = arith.addf %74, %75 : vector<4x8x16xf32>
    %cst_19 = arith.constant 0.213005543 : f32
    %77 = vector.broadcast %cst_19 : f32 to vector<4x8x16xf32>
    %78 = arith.mulf %77, %76 : vector<4x8x16xf32>
    %79 = arith.addf %73, %78 : vector<4x8x16xf32>
    %80 = vector.shape_cast %79 : vector<4x8x16xf32> to vector<32x16xf32>
    %81 = arith.truncf %80 : vector<32x16xf32> to vector<32x16xbf16>
    %c32 = arith.constant 32 : index
    %c0_20 = arith.constant 0 : index
    %82 = vector.load %arg6[%c32, %c0_20] : memref<160x16xbf16, #tpu.memory_space<vmem>>, vector<32x16xbf16>
    tpu.vector_store %arg6[%c32, %c0_20], %81 {strides = array<i32>} : memref<160x16xbf16, #tpu.memory_space<vmem>>, vector<32x16xbf16>,
    %83 = arith.mulf %9, %9 : vector<4x18x16xf32>
    %84 = vector.extract_strided_slice %83 {offsets = [0, 5, 0], sizes = [4, 8, 16], strides = [1, 1, 1]} : vector<4x18x16xf32> to vector<4x8x16xf32>
    %cst_21 = arith.constant 0.266011745 : f32
    %85 = vector.broadcast %cst_21 : f32 to vector<4x8x16xf32>
    %86 = arith.mulf %85, %84 : vector<4x8x16xf32>
    %87 = vector.extract_strided_slice %83 {offsets = [0, 0, 0], sizes = [4, 8, 16], strides = [1, 1, 1]} : vector<4x18x16xf32> to vector<4x8x16xf32>
    %88 = vector.extract_strided_slice %83 {offsets = [0, 10, 0], sizes = [4, 8, 16], strides = [1, 1, 1]} : vector<4x18x16xf32> to vector<4x8x16xf32>
    %89 = arith.addf %87, %88 : vector<4x8x16xf32>
    %cst_22 = arith.constant 0.00102838036 : f32
    %90 = vector.broadcast %cst_22 : f32 to vector<4x8x16xf32>
    %91 = arith.mulf %90, %89 : vector<4x8x16xf32>
    %92 = arith.addf %86, %91 : vector<4x8x16xf32>
    %93 = vector.extract_strided_slice %83 {offsets = [0, 1, 0], sizes = [4, 8, 16], strides = [1, 1, 1]} : vector<4x18x16xf32> to vector<4x8x16xf32>
    %94 = vector.extract_strided_slice %83 {offsets = [0, 9, 0], sizes = [4, 8, 16], strides = [1, 1, 1]} : vector<4x18x16xf32> to vector<4x8x16xf32>
    %95 = arith.addf %93, %94 : vector<4x8x16xf32>
    %cst_23 = arith.constant 0.00759875868 : f32
    %96 = vector.broadcast %cst_23 : f32 to vector<4x8x16xf32>
    %97 = arith.mulf %96, %95 : vector<4x8x16xf32>
    %98 = arith.addf %92, %97 : vector<4x8x16xf32>
    %99 = vector.extract_strided_slice %83 {offsets = [0, 2, 0], sizes = [4, 8, 16], strides = [1, 1, 1]} : vector<4x18x16xf32> to vector<4x8x16xf32>
    %100 = vector.extract_strided_slice %83 {offsets = [0, 8, 0], sizes = [4, 8, 16], strides = [1, 1, 1]} : vector<4x18x16xf32> to vector<4x8x16xf32>
    %101 = arith.addf %99, %100 : vector<4x8x16xf32>
    %cst_24 = arith.constant 0.0360007733 : f32
    %102 = vector.broadcast %cst_24 : f32 to vector<4x8x16xf32>
    %103 = arith.mulf %102, %101 : vector<4x8x16xf32>
    %104 = arith.addf %98, %103 : vector<4x8x16xf32>
    %105 = vector.extract_strided_slice %83 {offsets = [0, 3, 0], sizes = [4, 8, 16], strides = [1, 1, 1]} : vector<4x18x16xf32> to vector<4x8x16xf32>
    %106 = vector.extract_strided_slice %83 {offsets = [0, 7, 0], sizes = [4, 8, 16], strides = [1, 1, 1]} : vector<4x18x16xf32> to vector<4x8x16xf32>
    %107 = arith.addf %105, %106 : vector<4x8x16xf32>
    %cst_25 = arith.constant 0.109360702 : f32
    %108 = vector.broadcast %cst_25 : f32 to vector<4x8x16xf32>
    %109 = arith.mulf %108, %107 : vector<4x8x16xf32>
    %110 = arith.addf %104, %109 : vector<4x8x16xf32>
    %111 = vector.extract_strided_slice %83 {offsets = [0, 4, 0], sizes = [4, 8, 16], strides = [1, 1, 1]} : vector<4x18x16xf32> to vector<4x8x16xf32>
    %112 = vector.extract_strided_slice %83 {offsets = [0, 6, 0], sizes = [4, 8, 16], strides = [1, 1, 1]} : vector<4x18x16xf32> to vector<4x8x16xf32>
    %113 = arith.addf %111, %112 : vector<4x8x16xf32>
    %cst_26 = arith.constant 0.213005543 : f32
    %114 = vector.broadcast %cst_26 : f32 to vector<4x8x16xf32>
    %115 = arith.mulf %114, %113 : vector<4x8x16xf32>
    %116 = arith.addf %110, %115 : vector<4x8x16xf32>
    %117 = vector.shape_cast %116 : vector<4x8x16xf32> to vector<32x16xf32>
    %118 = arith.truncf %117 : vector<32x16xf32> to vector<32x16xbf16>
    %c64 = arith.constant 64 : index
    %c0_27 = arith.constant 0 : index
    %119 = vector.load %arg6[%c64, %c0_27] : memref<160x16xbf16, #tpu.memory_space<vmem>>, vector<32x16xbf16>
    tpu.vector_store %arg6[%c64, %c0_27], %118 {strides = array<i32>} : memref<160x16xbf16, #tpu.memory_space<vmem>>, vector<32x16xbf16>,
    %120 = arith.mulf %10, %10 : vector<4x18x16xf32>
    %121 = vector.extract_strided_slice %120 {offsets = [0, 5, 0], sizes = [4, 8, 16], strides = [1, 1, 1]} : vector<4x18x16xf32> to vector<4x8x16xf32>
    %cst_28 = arith.constant 0.266011745 : f32
    %122 = vector.broadcast %cst_28 : f32 to vector<4x8x16xf32>
    %123 = arith.mulf %122, %121 : vector<4x8x16xf32>
    %124 = vector.extract_strided_slice %120 {offsets = [0, 0, 0], sizes = [4, 8, 16], strides = [1, 1, 1]} : vector<4x18x16xf32> to vector<4x8x16xf32>
    %125 = vector.extract_strided_slice %120 {offsets = [0, 10, 0], sizes = [4, 8, 16], strides = [1, 1, 1]} : vector<4x18x16xf32> to vector<4x8x16xf32>
    %126 = arith.addf %124, %125 : vector<4x8x16xf32>
    %cst_29 = arith.constant 0.00102838036 : f32
    %127 = vector.broadcast %cst_29 : f32 to vector<4x8x16xf32>
    %128 = arith.mulf %127, %126 : vector<4x8x16xf32>
    %129 = arith.addf %123, %128 : vector<4x8x16xf32>
    %130 = vector.extract_strided_slice %120 {offsets = [0, 1, 0], sizes = [4, 8, 16], strides = [1, 1, 1]} : vector<4x18x16xf32> to vector<4x8x16xf32>
    %131 = vector.extract_strided_slice %120 {offsets = [0, 9, 0], sizes = [4, 8, 16], strides = [1, 1, 1]} : vector<4x18x16xf32> to vector<4x8x16xf32>
    %132 = arith.addf %130, %131 : vector<4x8x16xf32>
    %cst_30 = arith.constant 0.00759875868 : f32
    %133 = vector.broadcast %cst_30 : f32 to vector<4x8x16xf32>
    %134 = arith.mulf %133, %132 : vector<4x8x16xf32>
    %135 = arith.addf %129, %134 : vector<4x8x16xf32>
    %136 = vector.extract_strided_slice %120 {offsets = [0, 2, 0], sizes = [4, 8, 16], strides = [1, 1, 1]} : vector<4x18x16xf32> to vector<4x8x16xf32>
    %137 = vector.extract_strided_slice %120 {offsets = [0, 8, 0], sizes = [4, 8, 16], strides = [1, 1, 1]} : vector<4x18x16xf32> to vector<4x8x16xf32>
    %138 = arith.addf %136, %137 : vector<4x8x16xf32>
    %cst_31 = arith.constant 0.0360007733 : f32
    %139 = vector.broadcast %cst_31 : f32 to vector<4x8x16xf32>
    %140 = arith.mulf %139, %138 : vector<4x8x16xf32>
    %141 = arith.addf %135, %140 : vector<4x8x16xf32>
    %142 = vector.extract_strided_slice %120 {offsets = [0, 3, 0], sizes = [4, 8, 16], strides = [1, 1, 1]} : vector<4x18x16xf32> to vector<4x8x16xf32>
    %143 = vector.extract_strided_slice %120 {offsets = [0, 7, 0], sizes = [4, 8, 16], strides = [1, 1, 1]} : vector<4x18x16xf32> to vector<4x8x16xf32>
    %144 = arith.addf %142, %143 : vector<4x8x16xf32>
    %cst_32 = arith.constant 0.109360702 : f32
    %145 = vector.broadcast %cst_32 : f32 to vector<4x8x16xf32>
    %146 = arith.mulf %145, %144 : vector<4x8x16xf32>
    %147 = arith.addf %141, %146 : vector<4x8x16xf32>
    %148 = vector.extract_strided_slice %120 {offsets = [0, 4, 0], sizes = [4, 8, 16], strides = [1, 1, 1]} : vector<4x18x16xf32> to vector<4x8x16xf32>
    %149 = vector.extract_strided_slice %120 {offsets = [0, 6, 0], sizes = [4, 8, 16], strides = [1, 1, 1]} : vector<4x18x16xf32> to vector<4x8x16xf32>
    %150 = arith.addf %148, %149 : vector<4x8x16xf32>
    %cst_33 = arith.constant 0.213005543 : f32
    %151 = vector.broadcast %cst_33 : f32 to vector<4x8x16xf32>
    %152 = arith.mulf %151, %150 : vector<4x8x16xf32>
    %153 = arith.addf %147, %152 : vector<4x8x16xf32>
    %154 = vector.shape_cast %153 : vector<4x8x16xf32> to vector<32x16xf32>
    %155 = arith.truncf %154 : vector<32x16xf32> to vector<32x16xbf16>
    %c96 = arith.constant 96 : index
    %c0_34 = arith.constant 0 : index
    %156 = vector.load %arg6[%c96, %c0_34] : memref<160x16xbf16, #tpu.memory_space<vmem>>, vector<32x16xbf16>
    tpu.vector_store %arg6[%c96, %c0_34], %155 {strides = array<i32>} : memref<160x16xbf16, #tpu.memory_space<vmem>>, vector<32x16xbf16>,
    %157 = arith.mulf %9, %10 : vector<4x18x16xf32>
    %158 = vector.extract_strided_slice %157 {offsets = [0, 5, 0], sizes = [4, 8, 16], strides = [1, 1, 1]} : vector<4x18x16xf32> to vector<4x8x16xf32>
    %cst_35 = arith.constant 0.266011745 : f32
    %159 = vector.broadcast %cst_35 : f32 to vector<4x8x16xf32>
    %160 = arith.mulf %159, %158 : vector<4x8x16xf32>
    %161 = vector.extract_strided_slice %157 {offsets = [0, 0, 0], sizes = [4, 8, 16], strides = [1, 1, 1]} : vector<4x18x16xf32> to vector<4x8x16xf32>
    %162 = vector.extract_strided_slice %157 {offsets = [0, 10, 0], sizes = [4, 8, 16], strides = [1, 1, 1]} : vector<4x18x16xf32> to vector<4x8x16xf32>
    %163 = arith.addf %161, %162 : vector<4x8x16xf32>
    %cst_36 = arith.constant 0.00102838036 : f32
    %164 = vector.broadcast %cst_36 : f32 to vector<4x8x16xf32>
    %165 = arith.mulf %164, %163 : vector<4x8x16xf32>
    %166 = arith.addf %160, %165 : vector<4x8x16xf32>
    %167 = vector.extract_strided_slice %157 {offsets = [0, 1, 0], sizes = [4, 8, 16], strides = [1, 1, 1]} : vector<4x18x16xf32> to vector<4x8x16xf32>
    %168 = vector.extract_strided_slice %157 {offsets = [0, 9, 0], sizes = [4, 8, 16], strides = [1, 1, 1]} : vector<4x18x16xf32> to vector<4x8x16xf32>
    %169 = arith.addf %167, %168 : vector<4x8x16xf32>
    %cst_37 = arith.constant 0.00759875868 : f32
    %170 = vector.broadcast %cst_37 : f32 to vector<4x8x16xf32>
    %171 = arith.mulf %170, %169 : vector<4x8x16xf32>
    %172 = arith.addf %166, %171 : vector<4x8x16xf32>
    %173 = vector.extract_strided_slice %157 {offsets = [0, 2, 0], sizes = [4, 8, 16], strides = [1, 1, 1]} : vector<4x18x16xf32> to vector<4x8x16xf32>
    %174 = vector.extract_strided_slice %157 {offsets = [0, 8, 0], sizes = [4, 8, 16], strides = [1, 1, 1]} : vector<4x18x16xf32> to vector<4x8x16xf32>
    %175 = arith.addf %173, %174 : vector<4x8x16xf32>
    %cst_38 = arith.constant 0.0360007733 : f32
    %176 = vector.broadcast %cst_38 : f32 to vector<4x8x16xf32>
    %177 = arith.mulf %176, %175 : vector<4x8x16xf32>
    %178 = arith.addf %172, %177 : vector<4x8x16xf32>
    %179 = vector.extract_strided_slice %157 {offsets = [0, 3, 0], sizes = [4, 8, 16], strides = [1, 1, 1]} : vector<4x18x16xf32> to vector<4x8x16xf32>
    %180 = vector.extract_strided_slice %157 {offsets = [0, 7, 0], sizes = [4, 8, 16], strides = [1, 1, 1]} : vector<4x18x16xf32> to vector<4x8x16xf32>
    %181 = arith.addf %179, %180 : vector<4x8x16xf32>
    %cst_39 = arith.constant 0.109360702 : f32
    %182 = vector.broadcast %cst_39 : f32 to vector<4x8x16xf32>
    %183 = arith.mulf %182, %181 : vector<4x8x16xf32>
    %184 = arith.addf %178, %183 : vector<4x8x16xf32>
    %185 = vector.extract_strided_slice %157 {offsets = [0, 4, 0], sizes = [4, 8, 16], strides = [1, 1, 1]} : vector<4x18x16xf32> to vector<4x8x16xf32>
    %186 = vector.extract_strided_slice %157 {offsets = [0, 6, 0], sizes = [4, 8, 16], strides = [1, 1, 1]} : vector<4x18x16xf32> to vector<4x8x16xf32>
    %187 = arith.addf %185, %186 : vector<4x8x16xf32>
    %cst_40 = arith.constant 0.213005543 : f32
    %188 = vector.broadcast %cst_40 : f32 to vector<4x8x16xf32>
    %189 = arith.mulf %188, %187 : vector<4x8x16xf32>
    %190 = arith.addf %184, %189 : vector<4x8x16xf32>
    %191 = vector.shape_cast %190 : vector<4x8x16xf32> to vector<32x16xf32>
    %192 = arith.truncf %191 : vector<32x16xf32> to vector<32x16xbf16>
    %c128 = arith.constant 128 : index
    %c0_41 = arith.constant 0 : index
    %193 = vector.load %arg6[%c128, %c0_41] : memref<160x16xbf16, #tpu.memory_space<vmem>>, vector<32x16xbf16>
    tpu.vector_store %arg6[%c128, %c0_41], %192 {strides = array<i32>} : memref<160x16xbf16, #tpu.memory_space<vmem>>, vector<32x16xbf16>,
    %c0_42 = arith.constant 0 : index
    %c0_43 = arith.constant 0 : index
    %194 = vector.load %arg6[%c0_42, %c0_43] : memref<160x16xbf16, #tpu.memory_space<vmem>>, vector<160x16xbf16>
    %c0_44 = arith.constant 0 : index
    %c0_45 = arith.constant 0 : index
    %195 = vector.load %arg3[%c0_44, %c0_45] : memref<16x128xbf16, #tpu.memory_space<vmem>>, vector<16x128xbf16>
    %cst_46 = arith.constant dense<0.000000e+00> : vector<160x128xf32>
    %196 = tpu.matmul %194, %195, %cst_46 {dimension_numbers = #tpu.dot_dimension_numbers<[1], [0], [0], [1], [0, 0, 1, 1], [], []>} : vector<160x16xbf16>, vector<16x128xbf16>, vector<160x128xf32> -> vector<160x128xf32>
    %197 = vector.extract_strided_slice %196 {offsets = [0, 0], sizes = [32, 128], strides = [1, 1]} : vector<160x128xf32> to vector<32x128xf32>
    %198 = vector.extract_strided_slice %196 {offsets = [32, 0], sizes = [32, 128], strides = [1, 1]} : vector<160x128xf32> to vector<32x128xf32>
    %199 = vector.extract_strided_slice %196 {offsets = [64, 0], sizes = [32, 128], strides = [1, 1]} : vector<160x128xf32> to vector<32x128xf32>
    %200 = vector.extract_strided_slice %196 {offsets = [96, 0], sizes = [32, 128], strides = [1, 1]} : vector<160x128xf32> to vector<32x128xf32>
    %201 = vector.extract_strided_slice %196 {offsets = [128, 0], sizes = [32, 128], strides = [1, 1]} : vector<160x128xf32> to vector<32x128xf32>
    %202 = arith.mulf %197, %198 : vector<32x128xf32>
    %203 = arith.mulf %197, %197 : vector<32x128xf32>
    %204 = arith.mulf %198, %198 : vector<32x128xf32>
    %cst_47 = arith.constant 2.000000e+00 : f32
    %205 = vector.broadcast %cst_47 : f32 to vector<32x128xf32>
    %206 = arith.mulf %205, %202 : vector<32x128xf32>
    %cst_48 = arith.constant 9.99999974E-5 : f32
    %207 = vector.broadcast %cst_48 : f32 to vector<32x128xf32>
    %208 = arith.addf %206, %207 : vector<32x128xf32>
    %209 = arith.subf %201, %202 : vector<32x128xf32>
    %cst_49 = arith.constant 2.000000e+00 : f32
    %210 = vector.broadcast %cst_49 : f32 to vector<32x128xf32>
    %211 = arith.mulf %210, %209 : vector<32x128xf32>
    %cst_50 = arith.constant 8.99999984E-4 : f32
    %212 = vector.broadcast %cst_50 : f32 to vector<32x128xf32>
    %213 = arith.addf %211, %212 : vector<32x128xf32>
    %214 = arith.mulf %208, %213 : vector<32x128xf32>
    %215 = arith.addf %203, %204 : vector<32x128xf32>
    %cst_51 = arith.constant 9.99999974E-5 : f32
    %216 = vector.broadcast %cst_51 : f32 to vector<32x128xf32>
    %217 = arith.addf %215, %216 : vector<32x128xf32>
    %218 = arith.subf %199, %203 : vector<32x128xf32>
    %219 = arith.subf %200, %204 : vector<32x128xf32>
    %220 = arith.addf %218, %219 : vector<32x128xf32>
    %cst_52 = arith.constant 8.99999984E-4 : f32
    %221 = vector.broadcast %cst_52 : f32 to vector<32x128xf32>
    %222 = arith.addf %220, %221 : vector<32x128xf32>
    %223 = arith.mulf %217, %222 : vector<32x128xf32>
    %224 = tpu.reciprocal %223 {approx = true} : vector<32x128xf32> -> vector<32x128xf32>
    %225 = arith.mulf %223, %224 : vector<32x128xf32>
    %cst_53 = arith.constant 2.000000e+00 : f32
    %226 = vector.broadcast %cst_53 : f32 to vector<32x128xf32>
    %227 = arith.subf %226, %225 : vector<32x128xf32>
    %228 = arith.mulf %224, %227 : vector<32x128xf32>
    %229 = arith.mulf %214, %228 : vector<32x128xf32>
    %230 = vector.shape_cast %229 : vector<32x128xf32> to vector<4x8x128xf32>
    %c0_54 = arith.constant 0 : index
    %c0_55 = arith.constant 0 : index
    %231 = vector.load %arg4[%c0_54, %c0_55] : memref<8x128xf32, #tpu.memory_space<vmem>>, vector<8x128xf32>
    %232 = vector.shape_cast %231 : vector<8x128xf32> to vector<1x8x128xf32>
    %233 = vector.broadcast %232 : vector<1x8x128xf32> to vector<4x8x128xf32>
    %234 = arith.mulf %230, %233 : vector<4x8x128xf32>
    %235 = vector.shape_cast %234 : vector<4x8x128xf32> to vector<1x4x8x128xf32>
    %cst_56 = arith.constant dense<0.000000e+00> : vector<1xf32>
    %236 = vector.multi_reduction <add>, %235, %cst_56 [1, 2, 3] : vector<1x4x8x128xf32> to vector<1xf32>
    %237 = vector.shape_cast %236 : vector<1xf32> to vector<1x1x1x1xf32>
    %238 = vector.extract %237[0, 0, 0, 0] : f32 from vector<1x1x1x1xf32>
    %239 = tpu.iota {dimensions = array<i32: 1>} : vector<1x8x128xi32>
    %240 = tpu.iota {dimensions = array<i32: 2>} : vector<1x8x128xi32>
    %c0_i32 = arith.constant 0 : i32
    %241 = vector.broadcast %c0_i32 : i32 to vector<1x8x128xi32>
    %242 = arith.cmpi eq, %239, %241 : vector<1x8x128xi32>
    %c0_i32_57 = arith.constant 0 : i32
    %243 = vector.broadcast %c0_i32_57 : i32 to vector<1x8x128xi32>
    %244 = arith.cmpi eq, %240, %243 : vector<1x8x128xi32>
    %245 = arith.andi %242, %244 : vector<1x8x128xi1>
    %c0_i32_58 = arith.constant 0 : i32
    %246 = vector.broadcast %c0_i32_58 : i32 to vector<1x8x128xi32>
    %247 = arith.cmpi eq, %239, %246 : vector<1x8x128xi32>
    %c1_i32 = arith.constant 1 : i32
    %248 = vector.broadcast %c1_i32 : i32 to vector<1x8x128xi32>
    %249 = arith.cmpi eq, %240, %248 : vector<1x8x128xi32>
    %250 = arith.andi %247, %249 : vector<1x8x128xi1>
    %cst_59 = arith.constant 0.000000e+00 : f32
    %251 = vector.broadcast %238 : f32 to vector<1x8x128xf32>
    %252 = vector.broadcast %cst_59 : f32 to vector<1x8x128xf32>
    %253 = arith.select %250, %251, %252 : vector<1x8x128xi1>, vector<1x8x128xf32>
    %254 = vector.broadcast %7 : f32 to vector<1x8x128xf32>
    %255 = arith.select %245, %254, %253 : vector<1x8x128xi1>, vector<1x8x128xf32>
    %c0_60 = arith.constant 0 : index
    %c0_61 = arith.constant 0 : index
    %c0_62 = arith.constant 0 : index
    %256 = vector.load %arg5[%c0_60, %c0_61, %c0_62] : memref<1x8x128xf32, #tpu.memory_space<vmem>>, vector<1x8x128xf32>
    tpu.vector_store %arg5[%c0_60, %c0_61, %c0_62], %255 {strides = array<i32>} : memref<1x8x128xf32, #tpu.memory_space<vmem>>, vector<1x8x128xf32>,
    return
  }
  func.func @transform_0(%arg0: i32) -> (i32, i32, i32) {
    %c0_i32 = arith.constant 0 : i32
    %c0_i32_0 = arith.constant 0 : i32
    %c0_i32_1 = arith.constant 0 : i32
    return %arg0, %c0_i32, %c0_i32_0 : i32, i32, i32
  }
  func.func @transform_1(%arg0: i32) -> (i32, i32, i32) {
    %c0_i32 = arith.constant 0 : i32
    %c0_i32_0 = arith.constant 0 : i32
    %c0_i32_1 = arith.constant 0 : i32
    return %arg0, %c0_i32, %c0_i32_0 : i32, i32, i32
  }
  func.func @transform_2(%arg0: i32) -> (i32, i32) {
    %c0_i32 = arith.constant 0 : i32
    %c0_i32_0 = arith.constant 0 : i32
    %c0_i32_1 = arith.constant 0 : i32
    return %c0_i32, %c0_i32_0 : i32, i32
  }
  func.func @transform_3(%arg0: i32) -> (i32, i32) {
    %c0_i32 = arith.constant 0 : i32
    %c0_i32_0 = arith.constant 0 : i32
    %c0_i32_1 = arith.constant 0 : i32
    return %c0_i32, %c0_i32_0 : i32, i32
  }
  func.func @transform_4(%arg0: i32) -> (i32, i32, i32) {
    %c0_i32 = arith.constant 0 : i32
    %c0_i32_0 = arith.constant 0 : i32
    %c0_i32_1 = arith.constant 0 : i32
    return %arg0, %c0_i32, %c0_i32_0 : i32, i32, i32
  }
}

</mosaic_0001>

<llo_original>
// kernel: combined_mse_ssim_loss.1
$region0: #{combined_mse_ssim_loss.1}
  #allocation0 [shape = 'u32[]', space=smem, size = 0x4, offset = 0x4, fixed_abs, tag = 'smem constant byte address 0x4 - core index']
  #allocation1 [shape = 'u32[144,128]{1,0:T(1,128)}', space=vmem, size = 0x12000, scoped, tag = 'internal scratch']
  #allocation2 [shape = 'bf16[160,16]{1,0:T(8,128)(2,1)}', space=vmem, size = 0xa000, scoped, tag = 'scratch operand']
  %s0 = inlined_call_operand.hbm [shape: f32[8,16,16], index: 0, kind: input, shape index: {}]
  %s1 = inlined_call_operand.hbm [shape: f32[8,16,16], index: 1, kind: input, shape index: {}]
  %s2 = inlined_call_operand.vmem [shape: bf16[16,128], index: 2, kind: input, shape index: {}]
  %s3 = inlined_call_operand.vmem [shape: f32[8,128], index: 3, kind: input, shape index: {}]
  %s4 = inlined_call_operand.vmem [shape: f32[2,8,128], index: 4, kind: output, shape index: {}]
  %s5 = sld [smem:[#allocation0]]
  $region57: #{combined_mse_ssim_loss.1} parent=0
    _
  %s7 = ssub.s32 1, %s5
  %s8 = scalar_select 0, %s7, %s5
  $region1: #{combined_mse_ssim_loss.1} parent=0
    #allocation3 [shape = 'u8[65536]{0}', space=vmem, size = 0x10000, scoped, tag = 'input window, operand 0']
    #allocation4 [shape = 's32[2]{0}', space=sflag, size = 0x8, scoped, tag = 'scoped memory for combined_mse_ssim_loss.1']
    #allocation5 [shape = 'u8[65536]{0}', space=vmem, size = 0x10000, scoped, tag = 'input window, operand 1']
    #allocation6 [shape = 's32[2]{0}', space=sflag, size = 0x8, scoped, tag = 'scoped memory for combined_mse_ssim_loss.1']
    %9 = vsyncpa [#allocation4], 0
    %s10 = scalar_lea.sflag [#allocation4], 1
    %11 = vsyncpa %s10, 0
    %12 = vsyncpa [#allocation6], 0
    %s13 = scalar_lea.sflag [#allocation6], 1
    %14 = vsyncpa %s13, 0
    loop: start=0, step=1, limit=4
    $region2: #{combined_mse_ssim_loss.1} parent=1 // loop_pre_header
      _
    $region3: #{combined_mse_ssim_loss.1} parent=1 // loop_header
      %s16 = sphi 0, %s20
      %p17 = scmp.ge.s32.totalorder %s16, 4
      %s26 = sphi 0, %s28
      %s29 = sphi 0, %s26
      %s30 = sphi 0, %s29
      %s46 = sphi 0, %s30
      %s52 = sphi 0, %s54
      %s55 = sphi 0, %s52
      %s56 = sphi 0, %s55
      %s72 = sphi 0, %s56
      %s76 = sphi 0, %s76
      %s78 = sphi 0, %s76
      %s79 = sphi 0, %s78
      %s93 = sphi 0, %s79
      %s97 = sphi 0, %s97
      %s99 = sphi 0, %s97
      %s100 = sphi 0, %s99
      %s114 = sphi 0, %s100
      %s120 = sphi 0, %s122
      %s123 = sphi 0, %s120
      %s124 = sphi 0, %s123
      %s140 = sphi 0, %s124
    $region4: #{combined_mse_ssim_loss.1} parent=1 // loop_header_branch
      %19 = sbr.rel (%p17) target = $region8
    $region5: #{combined_mse_ssim_loss.1} parent=1 // loop_body
      %s21 = ssub.s32 %s16, 1
      %s22 = ssub.s32 %s16, 2
      %s23 = sadd.s32 %s16, 1
      %s24 = ssub.s32 %s16, %s23
      %p25 = scmp.eq.s32.totalorder %s24, 0
      %s27 = sadd.s32 %s26, 1
      %s28 = scalar_select %p25, %s26, %s27
      %p31 = pneg %p25
      %p32 = scmp.eq.s32.totalorder %s16, 1
      %p33 = por %p31, %p32
      %p34 = scmp.ne.s32.totalorder %s26, %s29
      %p35 = scmp.eq.s32.totalorder %s16, 0
      %p36 = por %p34, %p35
      %p37 = scmp.ne.s32.totalorder %s26, %s29
      %p38 = scmp.eq.s32.totalorder %s21, 1
      %p39 = por %p37, %p38
      %p40 = scmp.ne.s32.totalorder %s29, %s30
      %p41 = scmp.eq.s32.totalorder %s21, 0
      %p42 = por %p40, %p41
      %p43 = scmp.ne.s32.totalorder %s29, %s30
      %p44 = scmp.eq.s32.totalorder %s22, 1
      %p45 = por %p43, %p44
      %p47 = scmp.ne.s32.totalorder %s30, %s46
      %p48 = scmp.eq.s32.totalorder %s22, 0
      %p49 = por %p47, %p48
      %s50 = ssub.s32 %s16, %s23
      %p51 = scmp.eq.s32.totalorder %s50, 0
      %s53 = sadd.s32 %s52, 1
      %s54 = scalar_select %p51, %s52, %s53
      %p57 = pneg %p51
      %p58 = scmp.eq.s32.totalorder %s16, 1
      %p59 = por %p57, %p58
      %p60 = scmp.ne.s32.totalorder %s52, %s55
      %p61 = scmp.eq.s32.totalorder %s16, 0
      %p62 = por %p60, %p61
      %p63 = scmp.ne.s32.totalorder %s52, %s55
      %p64 = scmp.eq.s32.totalorder %s21, 1
      %p65 = por %p63, %p64
      %p66 = scmp.ne.s32.totalorder %s55, %s56
      %p67 = scmp.eq.s32.totalorder %s21, 0
      %p68 = por %p66, %p67
      %p69 = scmp.ne.s32.totalorder %s55, %s56
      %p70 = scmp.eq.s32.totalorder %s22, 1
      %p71 = por %p69, %p70
      %p73 = scmp.ne.s32.totalorder %s56, %s72
      %p74 = scmp.eq.s32.totalorder %s22, 0
      %p75 = por %p73, %p74
      %s77 = sadd.s32 %s76, 1
      %p80 = scmp.eq.s32.totalorder %s16, 1
      %p81 = scmp.ne.s32.totalorder %s76, %s78
      %p82 = scmp.eq.s32.totalorder %s16, 0
      %p83 = por %p81, %p82
      %p84 = scmp.ne.s32.totalorder %s76, %s78
      %p85 = scmp.eq.s32.totalorder %s21, 1
      %p86 = por %p84, %p85
      %p87 = scmp.ne.s32.totalorder %s78, %s79
      %p88 = scmp.eq.s32.totalorder %s21, 0
      %p89 = por %p87, %p88
      %p90 = scmp.ne.s32.totalorder %s78, %s79
      %p91 = scmp.eq.s32.totalorder %s22, 1
      %p92 = por %p90, %p91
      %p94 = scmp.ne.s32.totalorder %s79, %s93
      %p95 = scmp.eq.s32.totalorder %s22, 0
      %p96 = por %p94, %p95
      %s98 = sadd.s32 %s97, 1
      %p101 = scmp.eq.s32.totalorder %s16, 1
      %p102 = scmp.ne.s32.totalorder %s97, %s99
      %p103 = scmp.eq.s32.totalorder %s16, 0
      %p104 = por %p102, %p103
      %p105 = scmp.ne.s32.totalorder %s97, %s99
      %p106 = scmp.eq.s32.totalorder %s21, 1
      %p107 = por %p105, %p106
      %p108 = scmp.ne.s32.totalorder %s99, %s100
      %p109 = scmp.eq.s32.totalorder %s21, 0
      %p110 = por %p108, %p109
      %p111 = scmp.ne.s32.totalorder %s99, %s100
      %p112 = scmp.eq.s32.totalorder %s22, 1
      %p113 = por %p111, %p112
      %p115 = scmp.ne.s32.totalorder %s100, %s114
      %p116 = scmp.eq.s32.totalorder %s22, 0
      %p117 = por %p115, %p116
      %s118 = ssub.s32 %s16, %s23
      %p119 = scmp.eq.s32.totalorder %s118, 0
      %s121 = sadd.s32 %s120, 1
      %s122 = scalar_select %p119, %s120, %s121
      %p125 = pneg %p119
      %p126 = scmp.eq.s32.totalorder %s16, 1
      %p127 = por %p125, %p126
      %p128 = scmp.ne.s32.totalorder %s120, %s123
      %p129 = scmp.eq.s32.totalorder %s16, 0
      %p130 = por %p128, %p129
      %p131 = scmp.ne.s32.totalorder %s120, %s123
      %p132 = scmp.eq.s32.totalorder %s21, 1
      %p133 = por %p131, %p132
      %p134 = scmp.ne.s32.totalorder %s123, %s124
      %p135 = scmp.eq.s32.totalorder %s21, 0
      %p136 = por %p134, %p135
      %p137 = scmp.ne.s32.totalorder %s123, %s124
      %p138 = scmp.eq.s32.totalorder %s22, 1
      %p139 = por %p137, %p138
      %p141 = scmp.ne.s32.totalorder %s124, %s140
      %p142 = scmp.eq.s32.totalorder %s22, 0
      %p143 = por %p141, %p142
      %p144 = scmp.le.s32.totalorder 1, %s16
      %p145 = scmp.lt.s32.totalorder %s16, 3
      %p146 = pnand %p144, %p145
      %p147 = pneg %p146
      // Predicated region
      $region9: #{combined_mse_ssim_loss.1} parent=5 // pred_check
        _
      $region10: #{combined_mse_ssim_loss.1} parent=5 // pred_check_branch
        %149 = sbr.rel (%p146) target = $region12
      $region11: #{combined_mse_ssim_loss.1} parent=5 // pred_region
        %s150 = ssub.s32 %s16, 1
        // Predicated region
        $region13: #{combined_mse_ssim_loss.1} parent=11 // pred_check
          %p151 = pneg %p89
        $region14: #{combined_mse_ssim_loss.1} parent=11 // pred_check_branch
          %153 = sbr.rel (%p151) target = $region16
        $region15: #{combined_mse_ssim_loss.1} parent=11 // pred_region
          _
        $region16: #{combined_mse_ssim_loss.1} parent=11 // pred_fallthru
          _
        // Predicated region
        $region17: #{combined_mse_ssim_loss.1} parent=11 // pred_check
          %p154 = pneg %p110
        $region18: #{combined_mse_ssim_loss.1} parent=11 // pred_check_branch
          %156 = sbr.rel (%p154) target = $region20
        $region19: #{combined_mse_ssim_loss.1} parent=11 // pred_region
          _
        $region20: #{combined_mse_ssim_loss.1} parent=11 // pred_fallthru
          _
      $region12: #{combined_mse_ssim_loss.1} parent=5 // pred_fallthru
        _
      %p157 = scmp.lt.s32.totalorder %s16, 2
      // Predicated region
      $region21: #{combined_mse_ssim_loss.1} parent=5 // pred_check
        %p158 = pneg %p157
      $region22: #{combined_mse_ssim_loss.1} parent=5 // pred_check_branch
        %160 = sbr.rel (%p158) target = $region24
      $region23: #{combined_mse_ssim_loss.1} parent=5 // pred_region
        // Predicated region
        $region25: #{combined_mse_ssim_loss.1} parent=23 // pred_check
          %p161 = pneg %p36
        $region26: #{combined_mse_ssim_loss.1} parent=23 // pred_check_branch
          %163 = sbr.rel (%p161) target = $region28
        $region27: #{combined_mse_ssim_loss.1} parent=23 // pred_region
          %s164 = sand.u32 %s26, 1
          %s165 = scalar_lea.sflag [#allocation4], %s164
          %s166 = sand.u32 %s26, 1
          %s167 = smul.addr %s166, 64
          %s168 = scalar_lea.vmem [#allocation3], %s167
          %s169 = smul.u32 4, %s16
          %s171 = ssub.s32 1024, 1024
          %172 = vsyncadd %s165, %s171
          %s173 = smul.addr %s169, 2
          %s174 = smul.addr %s173, 128
          %s175 = scalar_lea.hbm %s0, %s174
          %s176 = sshll.u32 %s168, 4
          %s177 = int_to_ptr.vmem [resolvable:$true] %s176
          %182 = dma.hbm_to_vmem [thread:$0]  %s175, 1024, %s177, %s165, 128, 128, 8
        $region28: #{combined_mse_ssim_loss.1} parent=23 // pred_fallthru
          _
        // Predicated region
        $region29: #{combined_mse_ssim_loss.1} parent=23 // pred_check
          %p183 = pneg %p62
        $region30: #{combined_mse_ssim_loss.1} parent=23 // pred_check_branch
          %185 = sbr.rel (%p183) target = $region32
        $region31: #{combined_mse_ssim_loss.1} parent=23 // pred_region
          %s186 = sand.u32 %s52, 1
          %s187 = scalar_lea.sflag [#allocation6], %s186
          %s188 = sand.u32 %s52, 1
          %s189 = smul.addr %s188, 64
          %s190 = scalar_lea.vmem [#allocation5], %s189
          %s191 = smul.u32 4, %s16
          %s193 = ssub.s32 1024, 1024
          %194 = vsyncadd %s187, %s193
          %s195 = smul.addr %s191, 2
          %s196 = smul.addr %s195, 128
          %s197 = scalar_lea.hbm %s1, %s196
          %s198 = sshll.u32 %s190, 4
          %s199 = int_to_ptr.vmem [resolvable:$true] %s198
          %204 = dma.hbm_to_vmem [thread:$0]  %s197, 1024, %s199, %s187, 128, 128, 8
        $region32: #{combined_mse_ssim_loss.1} parent=23 // pred_fallthru
          _
      $region24: #{combined_mse_ssim_loss.1} parent=5 // pred_fallthru
        _
      %p205 = scmp.le.s32.totalorder 1, %s16
      %p206 = scmp.lt.s32.totalorder %s16, 3
      %p207 = pnand %p205, %p206
      %p208 = pneg %p207
      // Predicated region
      $region33: #{combined_mse_ssim_loss.1} parent=5 // pred_check
        _
      $region34: #{combined_mse_ssim_loss.1} parent=5 // pred_check_branch
        %210 = sbr.rel (%p207) target = $region36
      $region35: #{combined_mse_ssim_loss.1} parent=5 // pred_region
        %s211 = ssub.s32 %s16, 1
        %s212 = sand.u32 %s29, 1
        %s213 = scalar_lea.sflag [#allocation4], %s212
        %s214 = sand.u32 %s29, 1
        %s215 = smul.addr %s214, 64
        %s216 = scalar_lea.vmem [#allocation3], %s215
        // Predicated region
        $region37: #{combined_mse_ssim_loss.1} parent=35 // pred_check
          %p217 = pneg %p42
        $region38: #{combined_mse_ssim_loss.1} parent=35 // pred_check_branch
          %219 = sbr.rel (%p217) target = $region40
        $region39: #{combined_mse_ssim_loss.1} parent=35 // pred_region
          %220 = dma.done %s213, 1024
        $region40: #{combined_mse_ssim_loss.1} parent=35 // pred_fallthru
          _
        %s221 = sand.u32 %s55, 1
        %s222 = scalar_lea.sflag [#allocation6], %s221
        %s223 = sand.u32 %s55, 1
        %s224 = smul.addr %s223, 64
        %s225 = scalar_lea.vmem [#allocation5], %s224
        // Predicated region
        $region41: #{combined_mse_ssim_loss.1} parent=35 // pred_check
          %p226 = pneg %p68
        $region42: #{combined_mse_ssim_loss.1} parent=35 // pred_check_branch
          %228 = sbr.rel (%p226) target = $region44
        $region43: #{combined_mse_ssim_loss.1} parent=35 // pred_region
          %229 = dma.done %s222, 1024
        $region44: #{combined_mse_ssim_loss.1} parent=35 // pred_fallthru
          _
        %s230 = sand.u32 %s29, 1
        %s231 = scalar_lea.sflag [#allocation4], %s230
        %s232 = sand.u32 %s29, 1
        %s233 = smul.addr %s232, 64
        %s234 = scalar_lea.vmem [#allocation3], %s233
        %p235 = pneg %p42
        %p236 = pneg %p39
        %s237 = sand.u32 %s55, 1
        %s238 = scalar_lea.sflag [#allocation6], %s237
        %s239 = sand.u32 %s55, 1
        %s240 = smul.addr %s239, 64
        %s241 = scalar_lea.vmem [#allocation5], %s240
        %p242 = pneg %p68
        %p243 = pneg %p65
        %p244 = pneg %p89
        %p245 = pneg %p86
        %p246 = pneg %p110
        %p247 = pneg %p107
        %p248 = pneg %p136
        %p249 = pneg %p133
        %p250 = scmp.lt.s32.totalorder %s21, 1
        %s251 = scalar_select %p250, %s21, 1
        %s252 = smul.addr %s251, 8
        %s253 = scalar_lea.vmem %s4, %s252
        %s254 = smul.u32 4, %s21
        %s255 = smul.u32 4, %s21
        %p256 = scmp.lt.s32.totalorder %s21, 1
        %s257 = scalar_select %p256, %s21, 1
        %s258 = smul.addr %s257, 8
        %s259 = scalar_lea.vmem %s4, %s258
        %v261 = vld [vmem:[%s216] sm:$0xff]
        %v262 = vld [vmem:[%s216 + $0x8] sm:$0xff]
        %v263 = vld [vmem:[%s216 + $0x10] sm:$0xff]
        %v264 = vld [vmem:[%s216 + $0x18] sm:$0xff]
        %v265 = vld [vmem:[%s216 + $0x20] sm:$0xff]
        %v266 = vld [vmem:[%s216 + $0x28] sm:$0xff]
        %v267 = vld [vmem:[%s216 + $0x30] sm:$0xff]
        %v268 = vld [vmem:[%s216 + $0x38] sm:$0xff]
        %v269 = vld [vmem:[%s225] sm:$0xff]
        %v270 = vld [vmem:[%s225 + $0x8] sm:$0xff]
        %v271 = vld [vmem:[%s225 + $0x10] sm:$0xff]
        %v272 = vld [vmem:[%s225 + $0x18] sm:$0xff]
        %v273 = vld [vmem:[%s225 + $0x20] sm:$0xff]
        %v274 = vld [vmem:[%s225 + $0x28] sm:$0xff]
        %v275 = vld [vmem:[%s225 + $0x30] sm:$0xff]
        %v276 = vld [vmem:[%s225 + $0x38] sm:$0xff]
        %v277 = vsub.f32 %v261, %v269
        %v278 = vsub.f32 %v262, %v270
        %v279 = vsub.f32 %v263, %v271
        %v280 = vsub.f32 %v264, %v272
        %v281 = vsub.f32 %v265, %v273
        %v282 = vsub.f32 %v266, %v274
        %v283 = vsub.f32 %v267, %v275
        %v284 = vsub.f32 %v268, %v276
        %v285 = vmul.f32 %v277, %v277
        %v286 = vmul.f32 %v278, %v278
        %v287 = vmul.f32 %v279, %v279
        %v288 = vmul.f32 %v280, %v280
        %v289 = vmul.f32 %v281, %v281
        %v290 = vmul.f32 %v282, %v282
        %v291 = vmul.f32 %v283, %v283
        %v292 = vmul.f32 %v284, %v284
        %vm293 = vcmask 130048
        %v294 = vsel %vm293, %v285, 0.0
        %v295 = vsel %vm293, %v286, 0.0
        %v296 = vadd.f32 %v294, %v295
        %v297 = vsel %vm293, %v287, 0.0
        %v298 = vadd.f32 %v296, %v297
        %v299 = vsel %vm293, %v288, 0.0
        %v300 = vadd.f32 %v298, %v299
        %v301 = vsel %vm293, %v289, 0.0
        %v302 = vadd.f32 %v300, %v301
        %v303 = vsel %vm293, %v290, 0.0
        %v304 = vadd.f32 %v302, %v303
        %v305 = vsel %vm293, %v291, 0.0
        %v306 = vadd.f32 %v304, %v305
        %v307 = vsel %vm293, %v292, 0.0
        %v308 = vadd.f32 %v306, %v307
        %309 = vadd.xlane.f32.xlu0 %v308
        %v310 = vpop.xlane.xlu0 %309
        %v311 = vrot.slane %v310, 4
        %v312 = vadd.f32 %v310, %v311
        %v313 = vrot.slane %v312, 2
        %v314 = vadd.f32 %v312, %v313
        %v315 = vrot.slane %v314, 1
        %v316 = vadd.f32 %v314, %v315
        %s317 = vtos %v316
        %v318 = vmul.f32 %v261, 0.26601174
        %v319 = vmul.f32 %v262, 0.26601174
        %v320 = vmul.f32 %v263, 0.26601174
        %v321 = vmul.f32 %v264, 0.26601174
        %v322 = vmul.f32 %v265, 0.26601174
        %v323 = vmul.f32 %v266, 0.26601174
        %v324 = vmul.f32 %v267, 0.26601174
        %v325 = vmul.f32 %v268, 0.26601174
        %vm331 = vcmask 1045504
        %v332 = vrot.slane %v262, 2
        %v333 = vrot.slane 0.0, 2
        %v334 = vsel %vm331, %v332, %v333
        %v335 = vrot.slane %v264, 2
        %v336 = vsel %vm331, %v335, %v333
        %v337 = vrot.slane %v266, 2
        %v338 = vsel %vm331, %v337, %v333
        %v339 = vrot.slane %v268, 2
        %v340 = vsel %vm331, %v339, %v333
        %v345 = vadd.f32 %v261, %v334
        %v346 = vadd.f32 %v263, %v336
        %v347 = vadd.f32 %v265, %v338
        %v348 = vadd.f32 %v267, %v340
        %v349 = vmul.f32 %v345, 0.0010283804
        %v350 = vmul.f32 %v346, 0.0010283804
        %v351 = vmul.f32 %v347, 0.0010283804
        %v352 = vmul.f32 %v348, 0.0010283804
        %v357 = vrot.slane %v349, 3
        %v358 = vrot.slane %v350, 3
        %v359 = vrot.slane %v351, 3
        %v360 = vrot.slane %v352, 3
        %v365 = vadd.f32 %v318, %v357
        %v366 = vadd.f32 %v319, %v357
        %v367 = vadd.f32 %v320, %v358
        %v368 = vadd.f32 %v321, %v358
        %v369 = vadd.f32 %v322, %v359
        %v370 = vadd.f32 %v323, %v359
        %v371 = vadd.f32 %v324, %v360
        %v372 = vadd.f32 %v325, %v360
        %v373 = vadd.f32 %v261, %v262
        %v374 = vadd.f32 %v262, 0.0
        %v375 = vadd.f32 %v263, %v264
        %v376 = vadd.f32 %v264, 0.0
        %v377 = vadd.f32 %v265, %v266
        %v378 = vadd.f32 %v266, 0.0
        %v379 = vadd.f32 %v267, %v268
        %v380 = vadd.f32 %v268, 0.0
        %v381 = vmul.f32 %v373, 0.0075987587
        %v382 = vmul.f32 %v374, 0.0075987587
        %v383 = vmul.f32 %v375, 0.0075987587
        %v384 = vmul.f32 %v376, 0.0075987587
        %v385 = vmul.f32 %v377, 0.0075987587
        %v386 = vmul.f32 %v378, 0.0075987587
        %v387 = vmul.f32 %v379, 0.0075987587
        %v388 = vmul.f32 %v380, 0.0075987587
        %vm397 = vcmask 1043456
        %v398 = vrot.slane %v381, 4
        %v399 = vrot.slane %v382, 4
        %v400 = vsel %vm397, %v398, %v399
        %v401 = vrot.slane %v383, 4
        %v402 = vrot.slane %v384, 4
        %v403 = vsel %vm397, %v401, %v402
        %v404 = vrot.slane %v385, 4
        %v405 = vrot.slane %v386, 4
        %v406 = vsel %vm397, %v404, %v405
        %v407 = vrot.slane %v387, 4
        %v408 = vrot.slane %v388, 4
        %v409 = vsel %vm397, %v407, %v408
        %v418 = vadd.f32 %v365, %v398
        %v419 = vadd.f32 %v366, %v400
        %v420 = vadd.f32 %v367, %v401
        %v421 = vadd.f32 %v368, %v403
        %v422 = vadd.f32 %v369, %v404
        %v423 = vadd.f32 %v370, %v406
        %v424 = vadd.f32 %v371, %v407
        %v425 = vadd.f32 %v372, %v409
        %v426 = vrot.slane %v262, 6
        %v427 = vrot.slane %v264, 6
        %v428 = vrot.slane %v266, 6
        %v429 = vrot.slane %v268, 6
        %v434 = vadd.f32 %v261, %v426
        %v435 = vadd.f32 %v262, %v426
        %v436 = vadd.f32 %v263, %v427
        %v437 = vadd.f32 %v264, %v427
        %v438 = vadd.f32 %v265, %v428
        %v439 = vadd.f32 %v266, %v428
        %v440 = vadd.f32 %v267, %v429
        %v441 = vadd.f32 %v268, %v429
        %v442 = vmul.f32 %v434, 0.036000773
        %v443 = vmul.f32 %v435, 0.036000773
        %v444 = vmul.f32 %v436, 0.036000773
        %v445 = vmul.f32 %v437, 0.036000773
        %v446 = vmul.f32 %v438, 0.036000773
        %v447 = vmul.f32 %v439, 0.036000773
        %v448 = vmul.f32 %v440, 0.036000773
        %v449 = vmul.f32 %v441, 0.036000773
        %vm458 = vcmask 1042432
        %v459 = vrot.slane %v442, 5
        %v460 = vrot.slane %v443, 5
        %v461 = vsel %vm458, %v459, %v460
        %v462 = vrot.slane %v444, 5
        %v463 = vrot.slane %v445, 5
        %v464 = vsel %vm458, %v462, %v463
        %v465 = vrot.slane %v446, 5
        %v466 = vrot.slane %v447, 5
        %v467 = vsel %vm458, %v465, %v466
        %v468 = vrot.slane %v448, 5
        %v469 = vrot.slane %v449, 5
        %v470 = vsel %vm458, %v468, %v469
        %v479 = vadd.f32 %v418, %v459
        %v480 = vadd.f32 %v419, %v461
        %v481 = vadd.f32 %v420, %v462
        %v482 = vadd.f32 %v421, %v464
        %v483 = vadd.f32 %v422, %v465
        %v484 = vadd.f32 %v423, %v467
        %v485 = vadd.f32 %v424, %v468
        %v486 = vadd.f32 %v425, %v470
        %v491 = vrot.slane %v261, 4
        %v492 = vrot.slane %v262, 4
        %v493 = vsel %vm397, %v491, %v492
        %v494 = vrot.slane %v263, 4
        %v495 = vrot.slane %v264, 4
        %v496 = vsel %vm397, %v494, %v495
        %v497 = vrot.slane %v265, 4
        %v498 = vrot.slane %v266, 4
        %v499 = vsel %vm397, %v497, %v498
        %v500 = vrot.slane %v267, 4
        %v501 = vrot.slane %v268, 4
        %v502 = vsel %vm397, %v500, %v501
        %v511 = vadd.f32 %v261, %v493
        %v512 = vadd.f32 %v262, %v492
        %v513 = vadd.f32 %v263, %v496
        %v514 = vadd.f32 %v264, %v495
        %v515 = vadd.f32 %v265, %v499
        %v516 = vadd.f32 %v266, %v498
        %v517 = vadd.f32 %v267, %v502
        %v518 = vadd.f32 %v268, %v501
        %v519 = vmul.f32 %v511, 0.1093607
        %v520 = vmul.f32 %v512, 0.1093607
        %v521 = vmul.f32 %v513, 0.1093607
        %v522 = vmul.f32 %v514, 0.1093607
        %v523 = vmul.f32 %v515, 0.1093607
        %v524 = vmul.f32 %v516, 0.1093607
        %v525 = vmul.f32 %v517, 0.1093607
        %v526 = vmul.f32 %v518, 0.1093607
        %vm535 = vcmask 1041408
        %v536 = vrot.slane %v519, 6
        %v537 = vrot.slane %v520, 6
        %v538 = vsel %vm535, %v536, %v537
        %v539 = vrot.slane %v521, 6
        %v540 = vrot.slane %v522, 6
        %v541 = vsel %vm535, %v539, %v540
        %v542 = vrot.slane %v523, 6
        %v543 = vrot.slane %v524, 6
        %v544 = vsel %vm535, %v542, %v543
        %v545 = vrot.slane %v525, 6
        %v546 = vrot.slane %v526, 6
        %v547 = vsel %vm535, %v545, %v546
        %v556 = vadd.f32 %v479, %v536
        %v557 = vadd.f32 %v480, %v538
        %v558 = vadd.f32 %v481, %v539
        %v559 = vadd.f32 %v482, %v541
        %v560 = vadd.f32 %v483, %v542
        %v561 = vadd.f32 %v484, %v544
        %v562 = vadd.f32 %v485, %v545
        %v563 = vadd.f32 %v486, %v547
        %v564 = vrot.slane %v261, 2
        %v565 = vsel %vm331, %v564, %v332
        %v566 = vrot.slane %v263, 2
        %v567 = vsel %vm331, %v566, %v335
        %v568 = vrot.slane %v265, 2
        %v569 = vsel %vm331, %v568, %v337
        %v570 = vrot.slane %v267, 2
        %v571 = vsel %vm331, %v570, %v339
        %v580 = vadd.f32 %v261, %v565
        %v581 = vadd.f32 %v262, %v332
        %v582 = vadd.f32 %v263, %v567
        %v583 = vadd.f32 %v264, %v335
        %v584 = vadd.f32 %v265, %v569
        %v585 = vadd.f32 %v266, %v337
        %v586 = vadd.f32 %v267, %v571
        %v587 = vadd.f32 %v268, %v339
        %v588 = vmul.f32 %v580, 0.21300554
        %v589 = vmul.f32 %v581, 0.21300554
        %v590 = vmul.f32 %v582, 0.21300554
        %v591 = vmul.f32 %v583, 0.21300554
        %v592 = vmul.f32 %v584, 0.21300554
        %v593 = vmul.f32 %v585, 0.21300554
        %v594 = vmul.f32 %v586, 0.21300554
        %v595 = vmul.f32 %v587, 0.21300554
        %vm604 = vcmask 1040384
        %v605 = vrot.slane %v588, 7
        %v606 = vrot.slane %v589, 7
        %v607 = vsel %vm604, %v605, %v606
        %v608 = vrot.slane %v590, 7
        %v609 = vrot.slane %v591, 7
        %v610 = vsel %vm604, %v608, %v609
        %v611 = vrot.slane %v592, 7
        %v612 = vrot.slane %v593, 7
        %v613 = vsel %vm604, %v611, %v612
        %v614 = vrot.slane %v594, 7
        %v615 = vrot.slane %v595, 7
        %v616 = vsel %vm604, %v614, %v615
        %v625 = vadd.f32 %v556, %v605
        %v626 = vadd.f32 %v557, %v607
        %v627 = vadd.f32 %v558, %v608
        %v628 = vadd.f32 %v559, %v610
        %v629 = vadd.f32 %v560, %v611
        %v630 = vadd.f32 %v561, %v613
        %v631 = vadd.f32 %v562, %v614
        %v632 = vadd.f32 %v563, %v616
        %v641 = vrot.slane %v625, 5
        %v642 = vrot.slane %v626, 5
        %v643 = vsel %vm458, %v641, %v642
        %v644 = vrot.slane %v627, 5
        %v645 = vrot.slane %v628, 5
        %v646 = vsel %vm458, %v644, %v645
        %v647 = vrot.slane %v629, 5
        %v648 = vrot.slane %v630, 5
        %v649 = vsel %vm458, %v647, %v648
        %v650 = vrot.slane %v631, 5
        %v651 = vrot.slane %v632, 5
        %v652 = vsel %vm458, %v650, %v651
        %v657 = vpack.c.bf16 %v646, %v643
        %v658 = vpack.c.bf16 %v652, %v649
        %v661 = vunpack.c.l.b16 %v657
        %v662 = vunpack.c.h.b16 %v657
        %v663 = vunpack.c.l.b16 %v658
        %v664 = vunpack.c.h.b16 %v658
        %v665 = vpack.c.b16 %v661, %v661
        %v666 = vpack.c.b16 %v662, %v662
        %v667 = vpack.c.b16 %v663, %v663
        %v668 = vpack.c.b16 %v664, %v664
        %vm673 = vcmask 125952
        %674 = vst.msk [vmem:[#allocation2] sm:$0xf] %vm673, %v665
        %675 = vst.msk [vmem:[#allocation2 + $0x4] sm:$0xf] %vm673, %v666
        %676 = vst.msk [vmem:[#allocation2 + $0x8] sm:$0xf] %vm673, %v667
        %677 = vst.msk [vmem:[#allocation2 + $0xc] sm:$0xf] %vm673, %v668
        %v678 = vmul.f32 %v269, 0.26601174
        %v679 = vmul.f32 %v270, 0.26601174
        %v680 = vmul.f32 %v271, 0.26601174
        %v681 = vmul.f32 %v272, 0.26601174
        %v682 = vmul.f32 %v273, 0.26601174
        %v683 = vmul.f32 %v274, 0.26601174
        %v684 = vmul.f32 %v275, 0.26601174
        %v685 = vmul.f32 %v276, 0.26601174
        %v690 = vrot.slane %v270, 2
        %v691 = vsel %vm331, %v690, %v333
        %v692 = vrot.slane %v272, 2
        %v693 = vsel %vm331, %v692, %v333
        %v694 = vrot.slane %v274, 2
        %v695 = vsel %vm331, %v694, %v333
        %v696 = vrot.slane %v276, 2
        %v697 = vsel %vm331, %v696, %v333
        %v702 = vadd.f32 %v269, %v691
        %v703 = vadd.f32 %v271, %v693
        %v704 = vadd.f32 %v273, %v695
        %v705 = vadd.f32 %v275, %v697
        %v706 = vmul.f32 %v702, 0.0010283804
        %v707 = vmul.f32 %v703, 0.0010283804
        %v708 = vmul.f32 %v704, 0.0010283804
        %v709 = vmul.f32 %v705, 0.0010283804
        %v714 = vrot.slane %v706, 3
        %v715 = vrot.slane %v707, 3
        %v716 = vrot.slane %v708, 3
        %v717 = vrot.slane %v709, 3
        %v722 = vadd.f32 %v678, %v714
        %v723 = vadd.f32 %v679, %v714
        %v724 = vadd.f32 %v680, %v715
        %v725 = vadd.f32 %v681, %v715
        %v726 = vadd.f32 %v682, %v716
        %v727 = vadd.f32 %v683, %v716
        %v728 = vadd.f32 %v684, %v717
        %v729 = vadd.f32 %v685, %v717
        %v730 = vadd.f32 %v269, %v270
        %v731 = vadd.f32 %v270, 0.0
        %v732 = vadd.f32 %v271, %v272
        %v733 = vadd.f32 %v272, 0.0
        %v734 = vadd.f32 %v273, %v274
        %v735 = vadd.f32 %v274, 0.0
        %v736 = vadd.f32 %v275, %v276
        %v737 = vadd.f32 %v276, 0.0
        %v738 = vmul.f32 %v730, 0.0075987587
        %v739 = vmul.f32 %v731, 0.0075987587
        %v740 = vmul.f32 %v732, 0.0075987587
        %v741 = vmul.f32 %v733, 0.0075987587
        %v742 = vmul.f32 %v734, 0.0075987587
        %v743 = vmul.f32 %v735, 0.0075987587
        %v744 = vmul.f32 %v736, 0.0075987587
        %v745 = vmul.f32 %v737, 0.0075987587
        %v754 = vrot.slane %v738, 4
        %v755 = vrot.slane %v739, 4
        %v756 = vsel %vm397, %v754, %v755
        %v757 = vrot.slane %v740, 4
        %v758 = vrot.slane %v741, 4
        %v759 = vsel %vm397, %v757, %v758
        %v760 = vrot.slane %v742, 4
        %v761 = vrot.slane %v743, 4
        %v762 = vsel %vm397, %v760, %v761
        %v763 = vrot.slane %v744, 4
        %v764 = vrot.slane %v745, 4
        %v765 = vsel %vm397, %v763, %v764
        %v774 = vadd.f32 %v722, %v754
        %v775 = vadd.f32 %v723, %v756
        %v776 = vadd.f32 %v724, %v757
        %v777 = vadd.f32 %v725, %v759
        %v778 = vadd.f32 %v726, %v760
        %v779 = vadd.f32 %v727, %v762
        %v780 = vadd.f32 %v728, %v763
        %v781 = vadd.f32 %v729, %v765
        %v782 = vrot.slane %v270, 6
        %v783 = vrot.slane %v272, 6
        %v784 = vrot.slane %v274, 6
        %v785 = vrot.slane %v276, 6
        %v790 = vadd.f32 %v269, %v782
        %v791 = vadd.f32 %v270, %v782
        %v792 = vadd.f32 %v271, %v783
        %v793 = vadd.f32 %v272, %v783
        %v794 = vadd.f32 %v273, %v784
        %v795 = vadd.f32 %v274, %v784
        %v796 = vadd.f32 %v275, %v785
        %v797 = vadd.f32 %v276, %v785
        %v798 = vmul.f32 %v790, 0.036000773
        %v799 = vmul.f32 %v791, 0.036000773
        %v800 = vmul.f32 %v792, 0.036000773
        %v801 = vmul.f32 %v793, 0.036000773
        %v802 = vmul.f32 %v794, 0.036000773
        %v803 = vmul.f32 %v795, 0.036000773
        %v804 = vmul.f32 %v796, 0.036000773
        %v805 = vmul.f32 %v797, 0.036000773
        %v814 = vrot.slane %v798, 5
        %v815 = vrot.slane %v799, 5
        %v816 = vsel %vm458, %v814, %v815
        %v817 = vrot.slane %v800, 5
        %v818 = vrot.slane %v801, 5
        %v819 = vsel %vm458, %v817, %v818
        %v820 = vrot.slane %v802, 5
        %v821 = vrot.slane %v803, 5
        %v822 = vsel %vm458, %v820, %v821
        %v823 = vrot.slane %v804, 5
        %v824 = vrot.slane %v805, 5
        %v825 = vsel %vm458, %v823, %v824
        %v834 = vadd.f32 %v774, %v814
        %v835 = vadd.f32 %v775, %v816
        %v836 = vadd.f32 %v776, %v817
        %v837 = vadd.f32 %v777, %v819
        %v838 = vadd.f32 %v778, %v820
        %v839 = vadd.f32 %v779, %v822
        %v840 = vadd.f32 %v780, %v823
        %v841 = vadd.f32 %v781, %v825
        %v846 = vrot.slane %v269, 4
        %v847 = vrot.slane %v270, 4
        %v848 = vsel %vm397, %v846, %v847
        %v849 = vrot.slane %v271, 4
        %v850 = vrot.slane %v272, 4
        %v851 = vsel %vm397, %v849, %v850
        %v852 = vrot.slane %v273, 4
        %v853 = vrot.slane %v274, 4
        %v854 = vsel %vm397, %v852, %v853
        %v855 = vrot.slane %v275, 4
        %v856 = vrot.slane %v276, 4
        %v857 = vsel %vm397, %v855, %v856
        %v866 = vadd.f32 %v269, %v848
        %v867 = vadd.f32 %v270, %v847
        %v868 = vadd.f32 %v271, %v851
        %v869 = vadd.f32 %v272, %v850
        %v870 = vadd.f32 %v273, %v854
        %v871 = vadd.f32 %v274, %v853
        %v872 = vadd.f32 %v275, %v857
        %v873 = vadd.f32 %v276, %v856
        %v874 = vmul.f32 %v866, 0.1093607
        %v875 = vmul.f32 %v867, 0.1093607
        %v876 = vmul.f32 %v868, 0.1093607
        %v877 = vmul.f32 %v869, 0.1093607
        %v878 = vmul.f32 %v870, 0.1093607
        %v879 = vmul.f32 %v871, 0.1093607
        %v880 = vmul.f32 %v872, 0.1093607
        %v881 = vmul.f32 %v873, 0.1093607
        %v890 = vrot.slane %v874, 6
        %v891 = vrot.slane %v875, 6
        %v892 = vsel %vm535, %v890, %v891
        %v893 = vrot.slane %v876, 6
        %v894 = vrot.slane %v877, 6
        %v895 = vsel %vm535, %v893, %v894
        %v896 = vrot.slane %v878, 6
        %v897 = vrot.slane %v879, 6
        %v898 = vsel %vm535, %v896, %v897
        %v899 = vrot.slane %v880, 6
        %v900 = vrot.slane %v881, 6
        %v901 = vsel %vm535, %v899, %v900
        %v910 = vadd.f32 %v834, %v890
        %v911 = vadd.f32 %v835, %v892
        %v912 = vadd.f32 %v836, %v893
        %v913 = vadd.f32 %v837, %v895
        %v914 = vadd.f32 %v838, %v896
        %v915 = vadd.f32 %v839, %v898
        %v916 = vadd.f32 %v840, %v899
        %v917 = vadd.f32 %v841, %v901
        %v918 = vrot.slane %v269, 2
        %v919 = vsel %vm331, %v918, %v690
        %v920 = vrot.slane %v271, 2
        %v921 = vsel %vm331, %v920, %v692
        %v922 = vrot.slane %v273, 2
        %v923 = vsel %vm331, %v922, %v694
        %v924 = vrot.slane %v275, 2
        %v925 = vsel %vm331, %v924, %v696
        %v934 = vadd.f32 %v269, %v919
        %v935 = vadd.f32 %v270, %v690
        %v936 = vadd.f32 %v271, %v921
        %v937 = vadd.f32 %v272, %v692
        %v938 = vadd.f32 %v273, %v923
        %v939 = vadd.f32 %v274, %v694
        %v940 = vadd.f32 %v275, %v925
        %v941 = vadd.f32 %v276, %v696
        %v942 = vmul.f32 %v934, 0.21300554
        %v943 = vmul.f32 %v935, 0.21300554
        %v944 = vmul.f32 %v936, 0.21300554
        %v945 = vmul.f32 %v937, 0.21300554
        %v946 = vmul.f32 %v938, 0.21300554
        %v947 = vmul.f32 %v939, 0.21300554
        %v948 = vmul.f32 %v940, 0.21300554
        %v949 = vmul.f32 %v941, 0.21300554
        %v958 = vrot.slane %v942, 7
        %v959 = vrot.slane %v943, 7
        %v960 = vsel %vm604, %v958, %v959
        %v961 = vrot.slane %v944, 7
        %v962 = vrot.slane %v945, 7
        %v963 = vsel %vm604, %v961, %v962
        %v964 = vrot.slane %v946, 7
        %v965 = vrot.slane %v947, 7
        %v966 = vsel %vm604, %v964, %v965
        %v967 = vrot.slane %v948, 7
        %v968 = vrot.slane %v949, 7
        %v969 = vsel %vm604, %v967, %v968
        %v978 = vadd.f32 %v910, %v958
        %v979 = vadd.f32 %v911, %v960
        %v980 = vadd.f32 %v912, %v961
        %v981 = vadd.f32 %v913, %v963
        %v982 = vadd.f32 %v914, %v964
        %v983 = vadd.f32 %v915, %v966
        %v984 = vadd.f32 %v916, %v967
        %v985 = vadd.f32 %v917, %v969
        %v994 = vrot.slane %v978, 5
        %v995 = vrot.slane %v979, 5
        %v996 = vsel %vm458, %v994, %v995
        %v997 = vrot.slane %v980, 5
        %v998 = vrot.slane %v981, 5
        %v999 = vsel %vm458, %v997, %v998
        %v1000 = vrot.slane %v982, 5
        %v1001 = vrot.slane %v983, 5
        %v1002 = vsel %vm458, %v1000, %v1001
        %v1003 = vrot.slane %v984, 5
        %v1004 = vrot.slane %v985, 5
        %v1005 = vsel %vm458, %v1003, %v1004
        %v1010 = vpack.c.bf16 %v999, %v996
        %v1011 = vpack.c.bf16 %v1005, %v1002
        %v1014 = vunpack.c.l.b16 %v1010
        %v1015 = vunpack.c.h.b16 %v1010
        %v1016 = vunpack.c.l.b16 %v1011
        %v1017 = vunpack.c.h.b16 %v1011
        %v1018 = vpack.c.b16 %v1014, %v1014
        %v1019 = vpack.c.b16 %v1015, %v1015
        %v1020 = vpack.c.b16 %v1016, %v1016
        %v1021 = vpack.c.b16 %v1017, %v1017
        %1026 = vst.msk [vmem:[#allocation2 + $0x10] sm:$0xf] %vm673, %v1018
        %1027 = vst.msk [vmem:[#allocation2 + $0x14] sm:$0xf] %vm673, %v1019
        %1028 = vst.msk [vmem:[#allocation2 + $0x18] sm:$0xf] %vm673, %v1020
        %1029 = vst.msk [vmem:[#allocation2 + $0x1c] sm:$0xf] %vm673, %v1021
        %v1030 = vmul.f32 %v261, %v261
        %v1031 = vmul.f32 %v262, %v262
        %v1032 = vmul.f32 %v263, %v263
        %v1033 = vmul.f32 %v264, %v264
        %v1034 = vmul.f32 %v265, %v265
        %v1035 = vmul.f32 %v266, %v266
        %v1036 = vmul.f32 %v267, %v267
        %v1037 = vmul.f32 %v268, %v268
        %v1038 = vmul.f32 %v1030, 0.26601174
        %v1039 = vmul.f32 %v1031, 0.26601174
        %v1040 = vmul.f32 %v1032, 0.26601174
        %v1041 = vmul.f32 %v1033, 0.26601174
        %v1042 = vmul.f32 %v1034, 0.26601174
        %v1043 = vmul.f32 %v1035, 0.26601174
        %v1044 = vmul.f32 %v1036, 0.26601174
        %v1045 = vmul.f32 %v1037, 0.26601174
        %v1050 = vrot.slane %v1031, 2
        %v1051 = vsel %vm331, %v1050, %v333
        %v1052 = vrot.slane %v1033, 2
        %v1053 = vsel %vm331, %v1052, %v333
        %v1054 = vrot.slane %v1035, 2
        %v1055 = vsel %vm331, %v1054, %v333
        %v1056 = vrot.slane %v1037, 2
        %v1057 = vsel %vm331, %v1056, %v333
        %v1062 = vadd.f32 %v1030, %v1051
        %v1063 = vadd.f32 %v1032, %v1053
        %v1064 = vadd.f32 %v1034, %v1055
        %v1065 = vadd.f32 %v1036, %v1057
        %v1066 = vmul.f32 %v1062, 0.0010283804
        %v1067 = vmul.f32 %v1063, 0.0010283804
        %v1068 = vmul.f32 %v1064, 0.0010283804
        %v1069 = vmul.f32 %v1065, 0.0010283804
        %v1074 = vrot.slane %v1066, 3
        %v1075 = vrot.slane %v1067, 3
        %v1076 = vrot.slane %v1068, 3
        %v1077 = vrot.slane %v1069, 3
        %v1082 = vadd.f32 %v1038, %v1074
        %v1083 = vadd.f32 %v1039, %v1074
        %v1084 = vadd.f32 %v1040, %v1075
        %v1085 = vadd.f32 %v1041, %v1075
        %v1086 = vadd.f32 %v1042, %v1076
        %v1087 = vadd.f32 %v1043, %v1076
        %v1088 = vadd.f32 %v1044, %v1077
        %v1089 = vadd.f32 %v1045, %v1077
        %v1090 = vadd.f32 %v1030, %v1031
        %v1091 = vadd.f32 %v1031, 0.0
        %v1092 = vadd.f32 %v1032, %v1033
        %v1093 = vadd.f32 %v1033, 0.0
        %v1094 = vadd.f32 %v1034, %v1035
        %v1095 = vadd.f32 %v1035, 0.0
        %v1096 = vadd.f32 %v1036, %v1037
        %v1097 = vadd.f32 %v1037, 0.0
        %v1098 = vmul.f32 %v1090, 0.0075987587
        %v1099 = vmul.f32 %v1091, 0.0075987587
        %v1100 = vmul.f32 %v1092, 0.0075987587
        %v1101 = vmul.f32 %v1093, 0.0075987587
        %v1102 = vmul.f32 %v1094, 0.0075987587
        %v1103 = vmul.f32 %v1095, 0.0075987587
        %v1104 = vmul.f32 %v1096, 0.0075987587
        %v1105 = vmul.f32 %v1097, 0.0075987587
        %v1114 = vrot.slane %v1098, 4
        %v1115 = vrot.slane %v1099, 4
        %v1116 = vsel %vm397, %v1114, %v1115
        %v1117 = vrot.slane %v1100, 4
        %v1118 = vrot.slane %v1101, 4
        %v1119 = vsel %vm397, %v1117, %v1118
        %v1120 = vrot.slane %v1102, 4
        %v1121 = vrot.slane %v1103, 4
        %v1122 = vsel %vm397, %v1120, %v1121
        %v1123 = vrot.slane %v1104, 4
        %v1124 = vrot.slane %v1105, 4
        %v1125 = vsel %vm397, %v1123, %v1124
        %v1134 = vadd.f32 %v1082, %v1114
        %v1135 = vadd.f32 %v1083, %v1116
        %v1136 = vadd.f32 %v1084, %v1117
        %v1137 = vadd.f32 %v1085, %v1119
        %v1138 = vadd.f32 %v1086, %v1120
        %v1139 = vadd.f32 %v1087, %v1122
        %v1140 = vadd.f32 %v1088, %v1123
        %v1141 = vadd.f32 %v1089, %v1125
        %v1142 = vrot.slane %v1031, 6
        %v1143 = vrot.slane %v1033, 6
        %v1144 = vrot.slane %v1035, 6
        %v1145 = vrot.slane %v1037, 6
        %v1150 = vadd.f32 %v1030, %v1142
        %v1151 = vadd.f32 %v1031, %v1142
        %v1152 = vadd.f32 %v1032, %v1143
        %v1153 = vadd.f32 %v1033, %v1143
        %v1154 = vadd.f32 %v1034, %v1144
        %v1155 = vadd.f32 %v1035, %v1144
        %v1156 = vadd.f32 %v1036, %v1145
        %v1157 = vadd.f32 %v1037, %v1145
        %v1158 = vmul.f32 %v1150, 0.036000773
        %v1159 = vmul.f32 %v1151, 0.036000773
        %v1160 = vmul.f32 %v1152, 0.036000773
        %v1161 = vmul.f32 %v1153, 0.036000773
        %v1162 = vmul.f32 %v1154, 0.036000773
        %v1163 = vmul.f32 %v1155, 0.036000773
        %v1164 = vmul.f32 %v1156, 0.036000773
        %v1165 = vmul.f32 %v1157, 0.036000773
        %v1174 = vrot.slane %v1158, 5
        %v1175 = vrot.slane %v1159, 5
        %v1176 = vsel %vm458, %v1174, %v1175
        %v1177 = vrot.slane %v1160, 5
        %v1178 = vrot.slane %v1161, 5
        %v1179 = vsel %vm458, %v1177, %v1178
        %v1180 = vrot.slane %v1162, 5
        %v1181 = vrot.slane %v1163, 5
        %v1182 = vsel %vm458, %v1180, %v1181
        %v1183 = vrot.slane %v1164, 5
        %v1184 = vrot.slane %v1165, 5
        %v1185 = vsel %vm458, %v1183, %v1184
        %v1194 = vadd.f32 %v1134, %v1174
        %v1195 = vadd.f32 %v1135, %v1176
        %v1196 = vadd.f32 %v1136, %v1177
        %v1197 = vadd.f32 %v1137, %v1179
        %v1198 = vadd.f32 %v1138, %v1180
        %v1199 = vadd.f32 %v1139, %v1182
        %v1200 = vadd.f32 %v1140, %v1183
        %v1201 = vadd.f32 %v1141, %v1185
        %v1206 = vrot.slane %v1030, 4
        %v1207 = vrot.slane %v1031, 4
        %v1208 = vsel %vm397, %v1206, %v1207
        %v1209 = vrot.slane %v1032, 4
        %v1210 = vrot.slane %v1033, 4
        %v1211 = vsel %vm397, %v1209, %v1210
        %v1212 = vrot.slane %v1034, 4
        %v1213 = vrot.slane %v1035, 4
        %v1214 = vsel %vm397, %v1212, %v1213
        %v1215 = vrot.slane %v1036, 4
        %v1216 = vrot.slane %v1037, 4
        %v1217 = vsel %vm397, %v1215, %v1216
        %v1226 = vadd.f32 %v1030, %v1208
        %v1227 = vadd.f32 %v1031, %v1207
        %v1228 = vadd.f32 %v1032, %v1211
        %v1229 = vadd.f32 %v1033, %v1210
        %v1230 = vadd.f32 %v1034, %v1214
        %v1231 = vadd.f32 %v1035, %v1213
        %v1232 = vadd.f32 %v1036, %v1217
        %v1233 = vadd.f32 %v1037, %v1216
        %v1234 = vmul.f32 %v1226, 0.1093607
        %v1235 = vmul.f32 %v1227, 0.1093607
        %v1236 = vmul.f32 %v1228, 0.1093607
        %v1237 = vmul.f32 %v1229, 0.1093607
        %v1238 = vmul.f32 %v1230, 0.1093607
        %v1239 = vmul.f32 %v1231, 0.1093607
        %v1240 = vmul.f32 %v1232, 0.1093607
        %v1241 = vmul.f32 %v1233, 0.1093607
        %v1250 = vrot.slane %v1234, 6
        %v1251 = vrot.slane %v1235, 6
        %v1252 = vsel %vm535, %v1250, %v1251
        %v1253 = vrot.slane %v1236, 6
        %v1254 = vrot.slane %v1237, 6
        %v1255 = vsel %vm535, %v1253, %v1254
        %v1256 = vrot.slane %v1238, 6
        %v1257 = vrot.slane %v1239, 6
        %v1258 = vsel %vm535, %v1256, %v1257
        %v1259 = vrot.slane %v1240, 6
        %v1260 = vrot.slane %v1241, 6
        %v1261 = vsel %vm535, %v1259, %v1260
        %v1270 = vadd.f32 %v1194, %v1250
        %v1271 = vadd.f32 %v1195, %v1252
        %v1272 = vadd.f32 %v1196, %v1253
        %v1273 = vadd.f32 %v1197, %v1255
        %v1274 = vadd.f32 %v1198, %v1256
        %v1275 = vadd.f32 %v1199, %v1258
        %v1276 = vadd.f32 %v1200, %v1259
        %v1277 = vadd.f32 %v1201, %v1261
        %v1278 = vrot.slane %v1030, 2
        %v1279 = vsel %vm331, %v1278, %v1050
        %v1280 = vrot.slane %v1032, 2
        %v1281 = vsel %vm331, %v1280, %v1052
        %v1282 = vrot.slane %v1034, 2
        %v1283 = vsel %vm331, %v1282, %v1054
        %v1284 = vrot.slane %v1036, 2
        %v1285 = vsel %vm331, %v1284, %v1056
        %v1294 = vadd.f32 %v1030, %v1279
        %v1295 = vadd.f32 %v1031, %v1050
        %v1296 = vadd.f32 %v1032, %v1281
        %v1297 = vadd.f32 %v1033, %v1052
        %v1298 = vadd.f32 %v1034, %v1283
        %v1299 = vadd.f32 %v1035, %v1054
        %v1300 = vadd.f32 %v1036, %v1285
        %v1301 = vadd.f32 %v1037, %v1056
        %v1302 = vmul.f32 %v1294, 0.21300554
        %v1303 = vmul.f32 %v1295, 0.21300554
        %v1304 = vmul.f32 %v1296, 0.21300554
        %v1305 = vmul.f32 %v1297, 0.21300554
        %v1306 = vmul.f32 %v1298, 0.21300554
        %v1307 = vmul.f32 %v1299, 0.21300554
        %v1308 = vmul.f32 %v1300, 0.21300554
        %v1309 = vmul.f32 %v1301, 0.21300554
        %v1318 = vrot.slane %v1302, 7
        %v1319 = vrot.slane %v1303, 7
        %v1320 = vsel %vm604, %v1318, %v1319
        %v1321 = vrot.slane %v1304, 7
        %v1322 = vrot.slane %v1305, 7
        %v1323 = vsel %vm604, %v1321, %v1322
        %v1324 = vrot.slane %v1306, 7
        %v1325 = vrot.slane %v1307, 7
        %v1326 = vsel %vm604, %v1324, %v1325
        %v1327 = vrot.slane %v1308, 7
        %v1328 = vrot.slane %v1309, 7
        %v1329 = vsel %vm604, %v1327, %v1328
        %v1338 = vadd.f32 %v1270, %v1318
        %v1339 = vadd.f32 %v1271, %v1320
        %v1340 = vadd.f32 %v1272, %v1321
        %v1341 = vadd.f32 %v1273, %v1323
        %v1342 = vadd.f32 %v1274, %v1324
        %v1343 = vadd.f32 %v1275, %v1326
        %v1344 = vadd.f32 %v1276, %v1327
        %v1345 = vadd.f32 %v1277, %v1329
        %v1354 = vrot.slane %v1338, 5
        %v1355 = vrot.slane %v1339, 5
        %v1356 = vsel %vm458, %v1354, %v1355
        %v1357 = vrot.slane %v1340, 5
        %v1358 = vrot.slane %v1341, 5
        %v1359 = vsel %vm458, %v1357, %v1358
        %v1360 = vrot.slane %v1342, 5
        %v1361 = vrot.slane %v1343, 5
        %v1362 = vsel %vm458, %v1360, %v1361
        %v1363 = vrot.slane %v1344, 5
        %v1364 = vrot.slane %v1345, 5
        %v1365 = vsel %vm458, %v1363, %v1364
        %v1370 = vpack.c.bf16 %v1359, %v1356
        %v1371 = vpack.c.bf16 %v1365, %v1362
        %v1374 = vunpack.c.l.b16 %v1370
        %v1375 = vunpack.c.h.b16 %v1370
        %v1376 = vunpack.c.l.b16 %v1371
        %v1377 = vunpack.c.h.b16 %v1371
        %v1378 = vpack.c.b16 %v1374, %v1374
        %v1379 = vpack.c.b16 %v1375, %v1375
        %v1380 = vpack.c.b16 %v1376, %v1376
        %v1381 = vpack.c.b16 %v1377, %v1377
        %1386 = vst.msk [vmem:[#allocation2 + $0x20] sm:$0xf] %vm673, %v1378
        %1387 = vst.msk [vmem:[#allocation2 + $0x24] sm:$0xf] %vm673, %v1379
        %1388 = vst.msk [vmem:[#allocation2 + $0x28] sm:$0xf] %vm673, %v1380
        %1389 = vst.msk [vmem:[#allocation2 + $0x2c] sm:$0xf] %vm673, %v1381
        %v1390 = vmul.f32 %v269, %v269
        %v1391 = vmul.f32 %v270, %v270
        %v1392 = vmul.f32 %v271, %v271
        %v1393 = vmul.f32 %v272, %v272
        %v1394 = vmul.f32 %v273, %v273
        %v1395 = vmul.f32 %v274, %v274
        %v1396 = vmul.f32 %v275, %v275
        %v1397 = vmul.f32 %v276, %v276
        %v1398 = vmul.f32 %v1390, 0.26601174
        %v1399 = vmul.f32 %v1391, 0.26601174
        %v1400 = vmul.f32 %v1392, 0.26601174
        %v1401 = vmul.f32 %v1393, 0.26601174
        %v1402 = vmul.f32 %v1394, 0.26601174
        %v1403 = vmul.f32 %v1395, 0.26601174
        %v1404 = vmul.f32 %v1396, 0.26601174
        %v1405 = vmul.f32 %v1397, 0.26601174
        %v1410 = vrot.slane %v1391, 2
        %v1411 = vsel %vm331, %v1410, %v333
        %v1412 = vrot.slane %v1393, 2
        %v1413 = vsel %vm331, %v1412, %v333
        %v1414 = vrot.slane %v1395, 2
        %v1415 = vsel %vm331, %v1414, %v333
        %v1416 = vrot.slane %v1397, 2
        %v1417 = vsel %vm331, %v1416, %v333
        %v1422 = vadd.f32 %v1390, %v1411
        %v1423 = vadd.f32 %v1392, %v1413
        %v1424 = vadd.f32 %v1394, %v1415
        %v1425 = vadd.f32 %v1396, %v1417
        %v1426 = vmul.f32 %v1422, 0.0010283804
        %v1427 = vmul.f32 %v1423, 0.0010283804
        %v1428 = vmul.f32 %v1424, 0.0010283804
        %v1429 = vmul.f32 %v1425, 0.0010283804
        %v1434 = vrot.slane %v1426, 3
        %v1435 = vrot.slane %v1427, 3
        %v1436 = vrot.slane %v1428, 3
        %v1437 = vrot.slane %v1429, 3
        %v1442 = vadd.f32 %v1398, %v1434
        %v1443 = vadd.f32 %v1399, %v1434
        %v1444 = vadd.f32 %v1400, %v1435
        %v1445 = vadd.f32 %v1401, %v1435
        %v1446 = vadd.f32 %v1402, %v1436
        %v1447 = vadd.f32 %v1403, %v1436
        %v1448 = vadd.f32 %v1404, %v1437
        %v1449 = vadd.f32 %v1405, %v1437
        %v1450 = vadd.f32 %v1390, %v1391
        %v1451 = vadd.f32 %v1391, 0.0
        %v1452 = vadd.f32 %v1392, %v1393
        %v1453 = vadd.f32 %v1393, 0.0
        %v1454 = vadd.f32 %v1394, %v1395
        %v1455 = vadd.f32 %v1395, 0.0
        %v1456 = vadd.f32 %v1396, %v1397
        %v1457 = vadd.f32 %v1397, 0.0
        %v1458 = vmul.f32 %v1450, 0.0075987587
        %v1459 = vmul.f32 %v1451, 0.0075987587
        %v1460 = vmul.f32 %v1452, 0.0075987587
        %v1461 = vmul.f32 %v1453, 0.0075987587
        %v1462 = vmul.f32 %v1454, 0.0075987587
        %v1463 = vmul.f32 %v1455, 0.0075987587
        %v1464 = vmul.f32 %v1456, 0.0075987587
        %v1465 = vmul.f32 %v1457, 0.0075987587
        %v1474 = vrot.slane %v1458, 4
        %v1475 = vrot.slane %v1459, 4
        %v1476 = vsel %vm397, %v1474, %v1475
        %v1477 = vrot.slane %v1460, 4
        %v1478 = vrot.slane %v1461, 4
        %v1479 = vsel %vm397, %v1477, %v1478
        %v1480 = vrot.slane %v1462, 4
        %v1481 = vrot.slane %v1463, 4
        %v1482 = vsel %vm397, %v1480, %v1481
        %v1483 = vrot.slane %v1464, 4
        %v1484 = vrot.slane %v1465, 4
        %v1485 = vsel %vm397, %v1483, %v1484
        %v1494 = vadd.f32 %v1442, %v1474
        %v1495 = vadd.f32 %v1443, %v1476
        %v1496 = vadd.f32 %v1444, %v1477
        %v1497 = vadd.f32 %v1445, %v1479
        %v1498 = vadd.f32 %v1446, %v1480
        %v1499 = vadd.f32 %v1447, %v1482
        %v1500 = vadd.f32 %v1448, %v1483
        %v1501 = vadd.f32 %v1449, %v1485
        %v1502 = vrot.slane %v1391, 6
        %v1503 = vrot.slane %v1393, 6
        %v1504 = vrot.slane %v1395, 6
        %v1505 = vrot.slane %v1397, 6
        %v1510 = vadd.f32 %v1390, %v1502
        %v1511 = vadd.f32 %v1391, %v1502
        %v1512 = vadd.f32 %v1392, %v1503
        %v1513 = vadd.f32 %v1393, %v1503
        %v1514 = vadd.f32 %v1394, %v1504
        %v1515 = vadd.f32 %v1395, %v1504
        %v1516 = vadd.f32 %v1396, %v1505
        %v1517 = vadd.f32 %v1397, %v1505
        %v1518 = vmul.f32 %v1510, 0.036000773
        %v1519 = vmul.f32 %v1511, 0.036000773
        %v1520 = vmul.f32 %v1512, 0.036000773
        %v1521 = vmul.f32 %v1513, 0.036000773
        %v1522 = vmul.f32 %v1514, 0.036000773
        %v1523 = vmul.f32 %v1515, 0.036000773
        %v1524 = vmul.f32 %v1516, 0.036000773
        %v1525 = vmul.f32 %v1517, 0.036000773
        %v1534 = vrot.slane %v1518, 5
        %v1535 = vrot.slane %v1519, 5
        %v1536 = vsel %vm458, %v1534, %v1535
        %v1537 = vrot.slane %v1520, 5
        %v1538 = vrot.slane %v1521, 5
        %v1539 = vsel %vm458, %v1537, %v1538
        %v1540 = vrot.slane %v1522, 5
        %v1541 = vrot.slane %v1523, 5
        %v1542 = vsel %vm458, %v1540, %v1541
        %v1543 = vrot.slane %v1524, 5
        %v1544 = vrot.slane %v1525, 5
        %v1545 = vsel %vm458, %v1543, %v1544
        %v1554 = vadd.f32 %v1494, %v1534
        %v1555 = vadd.f32 %v1495, %v1536
        %v1556 = vadd.f32 %v1496, %v1537
        %v1557 = vadd.f32 %v1497, %v1539
        %v1558 = vadd.f32 %v1498, %v1540
        %v1559 = vadd.f32 %v1499, %v1542
        %v1560 = vadd.f32 %v1500, %v1543
        %v1561 = vadd.f32 %v1501, %v1545
        %v1566 = vrot.slane %v1390, 4
        %v1567 = vrot.slane %v1391, 4
        %v1568 = vsel %vm397, %v1566, %v1567
        %v1569 = vrot.slane %v1392, 4
        %v1570 = vrot.slane %v1393, 4
        %v1571 = vsel %vm397, %v1569, %v1570
        %v1572 = vrot.slane %v1394, 4
        %v1573 = vrot.slane %v1395, 4
        %v1574 = vsel %vm397, %v1572, %v1573
        %v1575 = vrot.slane %v1396, 4
        %v1576 = vrot.slane %v1397, 4
        %v1577 = vsel %vm397, %v1575, %v1576
        %v1586 = vadd.f32 %v1390, %v1568
        %v1587 = vadd.f32 %v1391, %v1567
        %v1588 = vadd.f32 %v1392, %v1571
        %v1589 = vadd.f32 %v1393, %v1570
        %v1590 = vadd.f32 %v1394, %v1574
        %v1591 = vadd.f32 %v1395, %v1573
        %v1592 = vadd.f32 %v1396, %v1577
        %v1593 = vadd.f32 %v1397, %v1576
        %v1594 = vmul.f32 %v1586, 0.1093607
        %v1595 = vmul.f32 %v1587, 0.1093607
        %v1596 = vmul.f32 %v1588, 0.1093607
        %v1597 = vmul.f32 %v1589, 0.1093607
        %v1598 = vmul.f32 %v1590, 0.1093607
        %v1599 = vmul.f32 %v1591, 0.1093607
        %v1600 = vmul.f32 %v1592, 0.1093607
        %v1601 = vmul.f32 %v1593, 0.1093607
        %v1610 = vrot.slane %v1594, 6
        %v1611 = vrot.slane %v1595, 6
        %v1612 = vsel %vm535, %v1610, %v1611
        %v1613 = vrot.slane %v1596, 6
        %v1614 = vrot.slane %v1597, 6
        %v1615 = vsel %vm535, %v1613, %v1614
        %v1616 = vrot.slane %v1598, 6
        %v1617 = vrot.slane %v1599, 6
        %v1618 = vsel %vm535, %v1616, %v1617
        %v1619 = vrot.slane %v1600, 6
        %v1620 = vrot.slane %v1601, 6
        %v1621 = vsel %vm535, %v1619, %v1620
        %v1630 = vadd.f32 %v1554, %v1610
        %v1631 = vadd.f32 %v1555, %v1612
        %v1632 = vadd.f32 %v1556, %v1613
        %v1633 = vadd.f32 %v1557, %v1615
        %v1634 = vadd.f32 %v1558, %v1616
        %v1635 = vadd.f32 %v1559, %v1618
        %v1636 = vadd.f32 %v1560, %v1619
        %v1637 = vadd.f32 %v1561, %v1621
        %v1638 = vrot.slane %v1390, 2
        %v1639 = vsel %vm331, %v1638, %v1410
        %v1640 = vrot.slane %v1392, 2
        %v1641 = vsel %vm331, %v1640, %v1412
        %v1642 = vrot.slane %v1394, 2
        %v1643 = vsel %vm331, %v1642, %v1414
        %v1644 = vrot.slane %v1396, 2
        %v1645 = vsel %vm331, %v1644, %v1416
        %v1654 = vadd.f32 %v1390, %v1639
        %v1655 = vadd.f32 %v1391, %v1410
        %v1656 = vadd.f32 %v1392, %v1641
        %v1657 = vadd.f32 %v1393, %v1412
        %v1658 = vadd.f32 %v1394, %v1643
        %v1659 = vadd.f32 %v1395, %v1414
        %v1660 = vadd.f32 %v1396, %v1645
        %v1661 = vadd.f32 %v1397, %v1416
        %v1662 = vmul.f32 %v1654, 0.21300554
        %v1663 = vmul.f32 %v1655, 0.21300554
        %v1664 = vmul.f32 %v1656, 0.21300554
        %v1665 = vmul.f32 %v1657, 0.21300554
        %v1666 = vmul.f32 %v1658, 0.21300554
        %v1667 = vmul.f32 %v1659, 0.21300554
        %v1668 = vmul.f32 %v1660, 0.21300554
        %v1669 = vmul.f32 %v1661, 0.21300554
        %v1678 = vrot.slane %v1662, 7
        %v1679 = vrot.slane %v1663, 7
        %v1680 = vsel %vm604, %v1678, %v1679
        %v1681 = vrot.slane %v1664, 7
        %v1682 = vrot.slane %v1665, 7
        %v1683 = vsel %vm604, %v1681, %v1682
        %v1684 = vrot.slane %v1666, 7
        %v1685 = vrot.slane %v1667, 7
        %v1686 = vsel %vm604, %v1684, %v1685
        %v1687 = vrot.slane %v1668, 7
        %v1688 = vrot.slane %v1669, 7
        %v1689 = vsel %vm604, %v1687, %v1688
        %v1698 = vadd.f32 %v1630, %v1678
        %v1699 = vadd.f32 %v1631, %v1680
        %v1700 = vadd.f32 %v1632, %v1681
        %v1701 = vadd.f32 %v1633, %v1683
        %v1702 = vadd.f32 %v1634, %v1684
        %v1703 = vadd.f32 %v1635, %v1686
        %v1704 = vadd.f32 %v1636, %v1687
        %v1705 = vadd.f32 %v1637, %v1689
        %v1714 = vrot.slane %v1698, 5
        %v1715 = vrot.slane %v1699, 5
        %v1716 = vsel %vm458, %v1714, %v1715
        %v1717 = vrot.slane %v1700, 5
        %v1718 = vrot.slane %v1701, 5
        %v1719 = vsel %vm458, %v1717, %v1718
        %v1720 = vrot.slane %v1702, 5
        %v1721 = vrot.slane %v1703, 5
        %v1722 = vsel %vm458, %v1720, %v1721
        %v1723 = vrot.slane %v1704, 5
        %v1724 = vrot.slane %v1705, 5
        %v1725 = vsel %vm458, %v1723, %v1724
        %v1730 = vpack.c.bf16 %v1719, %v1716
        %v1731 = vpack.c.bf16 %v1725, %v1722
        %v1734 = vunpack.c.l.b16 %v1730
        %v1735 = vunpack.c.h.b16 %v1730
        %v1736 = vunpack.c.l.b16 %v1731
        %v1737 = vunpack.c.h.b16 %v1731
        %v1738 = vpack.c.b16 %v1734, %v1734
        %v1739 = vpack.c.b16 %v1735, %v1735
        %v1740 = vpack.c.b16 %v1736, %v1736
        %v1741 = vpack.c.b16 %v1737, %v1737
        %1746 = vst.msk [vmem:[#allocation2 + $0x30] sm:$0xf] %vm673, %v1738
        %1747 = vst.msk [vmem:[#allocation2 + $0x34] sm:$0xf] %vm673, %v1739
        %1748 = vst.msk [vmem:[#allocation2 + $0x38] sm:$0xf] %vm673, %v1740
        %1749 = vst.msk [vmem:[#allocation2 + $0x3c] sm:$0xf] %vm673, %v1741
        %v1750 = vmul.f32 %v261, %v269
        %v1751 = vmul.f32 %v262, %v270
        %v1752 = vmul.f32 %v263, %v271
        %v1753 = vmul.f32 %v264, %v272
        %v1754 = vmul.f32 %v265, %v273
        %v1755 = vmul.f32 %v266, %v274
        %v1756 = vmul.f32 %v267, %v275
        %v1757 = vmul.f32 %v268, %v276
        %v1758 = vmul.f32 %v1750, 0.26601174
        %v1759 = vmul.f32 %v1751, 0.26601174
        %v1760 = vmul.f32 %v1752, 0.26601174
        %v1761 = vmul.f32 %v1753, 0.26601174
        %v1762 = vmul.f32 %v1754, 0.26601174
        %v1763 = vmul.f32 %v1755, 0.26601174
        %v1764 = vmul.f32 %v1756, 0.26601174
        %v1765 = vmul.f32 %v1757, 0.26601174
        %v1770 = vrot.slane %v1751, 2
        %v1771 = vsel %vm331, %v1770, %v333
        %v1772 = vrot.slane %v1753, 2
        %v1773 = vsel %vm331, %v1772, %v333
        %v1774 = vrot.slane %v1755, 2
        %v1775 = vsel %vm331, %v1774, %v333
        %v1776 = vrot.slane %v1757, 2
        %v1777 = vsel %vm331, %v1776, %v333
        %v1782 = vadd.f32 %v1750, %v1771
        %v1783 = vadd.f32 %v1752, %v1773
        %v1784 = vadd.f32 %v1754, %v1775
        %v1785 = vadd.f32 %v1756, %v1777
        %v1786 = vmul.f32 %v1782, 0.0010283804
        %v1787 = vmul.f32 %v1783, 0.0010283804
        %v1788 = vmul.f32 %v1784, 0.0010283804
        %v1789 = vmul.f32 %v1785, 0.0010283804
        %v1794 = vrot.slane %v1786, 3
        %v1795 = vrot.slane %v1787, 3
        %v1796 = vrot.slane %v1788, 3
        %v1797 = vrot.slane %v1789, 3
        %v1802 = vadd.f32 %v1758, %v1794
        %v1803 = vadd.f32 %v1759, %v1794
        %v1804 = vadd.f32 %v1760, %v1795
        %v1805 = vadd.f32 %v1761, %v1795
        %v1806 = vadd.f32 %v1762, %v1796
        %v1807 = vadd.f32 %v1763, %v1796
        %v1808 = vadd.f32 %v1764, %v1797
        %v1809 = vadd.f32 %v1765, %v1797
        %v1810 = vadd.f32 %v1750, %v1751
        %v1811 = vadd.f32 %v1751, 0.0
        %v1812 = vadd.f32 %v1752, %v1753
        %v1813 = vadd.f32 %v1753, 0.0
        %v1814 = vadd.f32 %v1754, %v1755
        %v1815 = vadd.f32 %v1755, 0.0
        %v1816 = vadd.f32 %v1756, %v1757
        %v1817 = vadd.f32 %v1757, 0.0
        %v1818 = vmul.f32 %v1810, 0.0075987587
        %v1819 = vmul.f32 %v1811, 0.0075987587
        %v1820 = vmul.f32 %v1812, 0.0075987587
        %v1821 = vmul.f32 %v1813, 0.0075987587
        %v1822 = vmul.f32 %v1814, 0.0075987587
        %v1823 = vmul.f32 %v1815, 0.0075987587
        %v1824 = vmul.f32 %v1816, 0.0075987587
        %v1825 = vmul.f32 %v1817, 0.0075987587
        %v1834 = vrot.slane %v1818, 4
        %v1835 = vrot.slane %v1819, 4
        %v1836 = vsel %vm397, %v1834, %v1835
        %v1837 = vrot.slane %v1820, 4
        %v1838 = vrot.slane %v1821, 4
        %v1839 = vsel %vm397, %v1837, %v1838
        %v1840 = vrot.slane %v1822, 4
        %v1841 = vrot.slane %v1823, 4
        %v1842 = vsel %vm397, %v1840, %v1841
        %v1843 = vrot.slane %v1824, 4
        %v1844 = vrot.slane %v1825, 4
        %v1845 = vsel %vm397, %v1843, %v1844
        %v1854 = vadd.f32 %v1802, %v1834
        %v1855 = vadd.f32 %v1803, %v1836
        %v1856 = vadd.f32 %v1804, %v1837
        %v1857 = vadd.f32 %v1805, %v1839
        %v1858 = vadd.f32 %v1806, %v1840
        %v1859 = vadd.f32 %v1807, %v1842
        %v1860 = vadd.f32 %v1808, %v1843
        %v1861 = vadd.f32 %v1809, %v1845
        %v1862 = vrot.slane %v1751, 6
        %v1863 = vrot.slane %v1753, 6
        %v1864 = vrot.slane %v1755, 6
        %v1865 = vrot.slane %v1757, 6
        %v1870 = vadd.f32 %v1750, %v1862
        %v1871 = vadd.f32 %v1751, %v1862
        %v1872 = vadd.f32 %v1752, %v1863
        %v1873 = vadd.f32 %v1753, %v1863
        %v1874 = vadd.f32 %v1754, %v1864
        %v1875 = vadd.f32 %v1755, %v1864
        %v1876 = vadd.f32 %v1756, %v1865
        %v1877 = vadd.f32 %v1757, %v1865
        %v1878 = vmul.f32 %v1870, 0.036000773
        %v1879 = vmul.f32 %v1871, 0.036000773
        %v1880 = vmul.f32 %v1872, 0.036000773
        %v1881 = vmul.f32 %v1873, 0.036000773
        %v1882 = vmul.f32 %v1874, 0.036000773
        %v1883 = vmul.f32 %v1875, 0.036000773
        %v1884 = vmul.f32 %v1876, 0.036000773
        %v1885 = vmul.f32 %v1877, 0.036000773
        %v1894 = vrot.slane %v1878, 5
        %v1895 = vrot.slane %v1879, 5
        %v1896 = vsel %vm458, %v1894, %v1895
        %v1897 = vrot.slane %v1880, 5
        %v1898 = vrot.slane %v1881, 5
        %v1899 = vsel %vm458, %v1897, %v1898
        %v1900 = vrot.slane %v1882, 5
        %v1901 = vrot.slane %v1883, 5
        %v1902 = vsel %vm458, %v1900, %v1901
        %v1903 = vrot.slane %v1884, 5
        %v1904 = vrot.slane %v1885, 5
        %v1905 = vsel %vm458, %v1903, %v1904
        %v1914 = vadd.f32 %v1854, %v1894
        %v1915 = vadd.f32 %v1855, %v1896
        %v1916 = vadd.f32 %v1856, %v1897
        %v1917 = vadd.f32 %v1857, %v1899
        %v1918 = vadd.f32 %v1858, %v1900
        %v1919 = vadd.f32 %v1859, %v1902
        %v1920 = vadd.f32 %v1860, %v1903
        %v1921 = vadd.f32 %v1861, %v1905
        %v1926 = vrot.slane %v1750, 4
        %v1927 = vrot.slane %v1751, 4
        %v1928 = vsel %vm397, %v1926, %v1927
        %v1929 = vrot.slane %v1752, 4
        %v1930 = vrot.slane %v1753, 4
        %v1931 = vsel %vm397, %v1929, %v1930
        %v1932 = vrot.slane %v1754, 4
        %v1933 = vrot.slane %v1755, 4
        %v1934 = vsel %vm397, %v1932, %v1933
        %v1935 = vrot.slane %v1756, 4
        %v1936 = vrot.slane %v1757, 4
        %v1937 = vsel %vm397, %v1935, %v1936
        %v1946 = vadd.f32 %v1750, %v1928
        %v1947 = vadd.f32 %v1751, %v1927
        %v1948 = vadd.f32 %v1752, %v1931
        %v1949 = vadd.f32 %v1753, %v1930
        %v1950 = vadd.f32 %v1754, %v1934
        %v1951 = vadd.f32 %v1755, %v1933
        %v1952 = vadd.f32 %v1756, %v1937
        %v1953 = vadd.f32 %v1757, %v1936
        %v1954 = vmul.f32 %v1946, 0.1093607
        %v1955 = vmul.f32 %v1947, 0.1093607
        %v1956 = vmul.f32 %v1948, 0.1093607
        %v1957 = vmul.f32 %v1949, 0.1093607
        %v1958 = vmul.f32 %v1950, 0.1093607
        %v1959 = vmul.f32 %v1951, 0.1093607
        %v1960 = vmul.f32 %v1952, 0.1093607
        %v1961 = vmul.f32 %v1953, 0.1093607
        %v1970 = vrot.slane %v1954, 6
        %v1971 = vrot.slane %v1955, 6
        %v1972 = vsel %vm535, %v1970, %v1971
        %v1973 = vrot.slane %v1956, 6
        %v1974 = vrot.slane %v1957, 6
        %v1975 = vsel %vm535, %v1973, %v1974
        %v1976 = vrot.slane %v1958, 6
        %v1977 = vrot.slane %v1959, 6
        %v1978 = vsel %vm535, %v1976, %v1977
        %v1979 = vrot.slane %v1960, 6
        %v1980 = vrot.slane %v1961, 6
        %v1981 = vsel %vm535, %v1979, %v1980
        %v1990 = vadd.f32 %v1914, %v1970
        %v1991 = vadd.f32 %v1915, %v1972
        %v1992 = vadd.f32 %v1916, %v1973
        %v1993 = vadd.f32 %v1917, %v1975
        %v1994 = vadd.f32 %v1918, %v1976
        %v1995 = vadd.f32 %v1919, %v1978
        %v1996 = vadd.f32 %v1920, %v1979
        %v1997 = vadd.f32 %v1921, %v1981
        %v1998 = vrot.slane %v1750, 2
        %v1999 = vsel %vm331, %v1998, %v1770
        %v2000 = vrot.slane %v1752, 2
        %v2001 = vsel %vm331, %v2000, %v1772
        %v2002 = vrot.slane %v1754, 2
        %v2003 = vsel %vm331, %v2002, %v1774
        %v2004 = vrot.slane %v1756, 2
        %v2005 = vsel %vm331, %v2004, %v1776
        %v2014 = vadd.f32 %v1750, %v1999
        %v2015 = vadd.f32 %v1751, %v1770
        %v2016 = vadd.f32 %v1752, %v2001
        %v2017 = vadd.f32 %v1753, %v1772
        %v2018 = vadd.f32 %v1754, %v2003
        %v2019 = vadd.f32 %v1755, %v1774
        %v2020 = vadd.f32 %v1756, %v2005
        %v2021 = vadd.f32 %v1757, %v1776
        %v2022 = vmul.f32 %v2014, 0.21300554
        %v2023 = vmul.f32 %v2015, 0.21300554
        %v2024 = vmul.f32 %v2016, 0.21300554
        %v2025 = vmul.f32 %v2017, 0.21300554
        %v2026 = vmul.f32 %v2018, 0.21300554
        %v2027 = vmul.f32 %v2019, 0.21300554
        %v2028 = vmul.f32 %v2020, 0.21300554
        %v2029 = vmul.f32 %v2021, 0.21300554
        %v2038 = vrot.slane %v2022, 7
        %v2039 = vrot.slane %v2023, 7
        %v2040 = vsel %vm604, %v2038, %v2039
        %v2041 = vrot.slane %v2024, 7
        %v2042 = vrot.slane %v2025, 7
        %v2043 = vsel %vm604, %v2041, %v2042
        %v2044 = vrot.slane %v2026, 7
        %v2045 = vrot.slane %v2027, 7
        %v2046 = vsel %vm604, %v2044, %v2045
        %v2047 = vrot.slane %v2028, 7
        %v2048 = vrot.slane %v2029, 7
        %v2049 = vsel %vm604, %v2047, %v2048
        %v2058 = vadd.f32 %v1990, %v2038
        %v2059 = vadd.f32 %v1991, %v2040
        %v2060 = vadd.f32 %v1992, %v2041
        %v2061 = vadd.f32 %v1993, %v2043
        %v2062 = vadd.f32 %v1994, %v2044
        %v2063 = vadd.f32 %v1995, %v2046
        %v2064 = vadd.f32 %v1996, %v2047
        %v2065 = vadd.f32 %v1997, %v2049
        %v2074 = vrot.slane %v2058, 5
        %v2075 = vrot.slane %v2059, 5
        %v2076 = vsel %vm458, %v2074, %v2075
        %v2077 = vrot.slane %v2060, 5
        %v2078 = vrot.slane %v2061, 5
        %v2079 = vsel %vm458, %v2077, %v2078
        %v2080 = vrot.slane %v2062, 5
        %v2081 = vrot.slane %v2063, 5
        %v2082 = vsel %vm458, %v2080, %v2081
        %v2083 = vrot.slane %v2064, 5
        %v2084 = vrot.slane %v2065, 5
        %v2085 = vsel %vm458, %v2083, %v2084
        %v2090 = vpack.c.bf16 %v2079, %v2076
        %v2091 = vpack.c.bf16 %v2085, %v2082
        %v2094 = vunpack.c.l.b16 %v2090
        %v2095 = vunpack.c.h.b16 %v2090
        %v2096 = vunpack.c.l.b16 %v2091
        %v2097 = vunpack.c.h.b16 %v2091
        %v2098 = vpack.c.b16 %v2094, %v2094
        %v2099 = vpack.c.b16 %v2095, %v2095
        %v2100 = vpack.c.b16 %v2096, %v2096
        %v2101 = vpack.c.b16 %v2097, %v2097
        %2106 = vst.msk [vmem:[#allocation2 + $0x40] sm:$0xf] %vm673, %v2098
        %2107 = vst.msk [vmem:[#allocation2 + $0x44] sm:$0xf] %vm673, %v2099
        %2108 = vst.msk [vmem:[#allocation2 + $0x48] sm:$0xf] %vm673, %v2100
        %2109 = vst.msk [vmem:[#allocation2 + $0x4c] sm:$0xf] %vm673, %v2101
        %v2110 = vld [vmem:[#allocation2] sm:$0xf]
        %v2111 = vld [vmem:[#allocation2 + $0x4] sm:$0xf]
        %v2112 = vld [vmem:[#allocation2 + $0x8] sm:$0xf]
        %v2113 = vld [vmem:[#allocation2 + $0xc] sm:$0xf]
        %v2114 = vld [vmem:[#allocation2 + $0x10] sm:$0xf]
        %v2115 = vld [vmem:[#allocation2 + $0x14] sm:$0xf]
        %v2116 = vld [vmem:[#allocation2 + $0x18] sm:$0xf]
        %v2117 = vld [vmem:[#allocation2 + $0x1c] sm:$0xf]
        %v2118 = vld [vmem:[#allocation2 + $0x20] sm:$0xf]
        %v2119 = vld [vmem:[#allocation2 + $0x24] sm:$0xf]
        %v2120 = vld [vmem:[#allocation2 + $0x28] sm:$0xf]
        %v2121 = vld [vmem:[#allocation2 + $0x2c] sm:$0xf]
        %v2122 = vld [vmem:[#allocation2 + $0x30] sm:$0xf]
        %v2123 = vld [vmem:[#allocation2 + $0x34] sm:$0xf]
        %v2124 = vld [vmem:[#allocation2 + $0x38] sm:$0xf]
        %v2125 = vld [vmem:[#allocation2 + $0x3c] sm:$0xf]
        %v2126 = vld [vmem:[#allocation2 + $0x40] sm:$0xf]
        %v2127 = vld [vmem:[#allocation2 + $0x44] sm:$0xf]
        %v2128 = vld [vmem:[#allocation2 + $0x48] sm:$0xf]
        %v2129 = vld [vmem:[#allocation2 + $0x4c] sm:$0xf]
        %v2130 = vld [vmem:[%s2] sm:$0xf]
        %v2131 = vld [vmem:[%s2 + $0x4] sm:$0xf]
        %v2152 = vunpack.c.l.b16 %v2110
        %v2153 = vunpack.c.l.b16 %v2111
        %v2154 = vunpack.c.l.b16 %v2112
        %v2155 = vunpack.c.l.b16 %v2113
        %v2156 = vunpack.c.l.b16 %v2114
        %v2157 = vunpack.c.l.b16 %v2115
        %v2158 = vunpack.c.l.b16 %v2116
        %v2159 = vunpack.c.l.b16 %v2117
        %v2160 = vunpack.c.l.b16 %v2118
        %v2161 = vunpack.c.l.b16 %v2119
        %v2162 = vunpack.c.l.b16 %v2120
        %v2163 = vunpack.c.l.b16 %v2121
        %v2164 = vunpack.c.l.b16 %v2122
        %v2165 = vunpack.c.l.b16 %v2123
        %v2166 = vunpack.c.l.b16 %v2124
        %v2167 = vunpack.c.l.b16 %v2125
        %v2168 = vunpack.c.l.b16 %v2126
        %v2169 = vunpack.c.l.b16 %v2127
        %v2170 = vunpack.c.l.b16 %v2128
        %v2171 = vunpack.c.l.b16 %v2129
        %v2172 = vpack.c.b16 %v2153, %v2152
        %v2173 = vpack.c.b16 %v2155, %v2154
        %v2174 = vpack.c.b16 %v2157, %v2156
        %v2175 = vpack.c.b16 %v2159, %v2158
        %v2176 = vpack.c.b16 %v2161, %v2160
        %v2177 = vpack.c.b16 %v2163, %v2162
        %v2178 = vpack.c.b16 %v2165, %v2164
        %v2179 = vpack.c.b16 %v2167, %v2166
        %v2180 = vpack.c.b16 %v2169, %v2168
        %v2181 = vpack.c.b16 %v2171, %v2170
        %v2184 = vunpack.c.l.b16 %v2130
        %v2185 = vunpack.c.l.b16 %v2131
        %v2186 = vpack.c.b16 %v2185, %v2184
        %v2189 = vsel %vm293, %v2172, 0
        %v2192 = vsel %vm293, %v2173, 0
        %v2195 = vsel %vm293, %v2174, 0
        %v2198 = vsel %vm293, %v2175, 0
        %v2201 = vsel %vm293, %v2176, 0
        %v2204 = vsel %vm293, %v2177, 0
        %v2207 = vsel %vm293, %v2178, 0
        %v2210 = vsel %vm293, %v2179, 0
        %v2213 = vsel %vm293, %v2180, 0
        %v2216 = vsel %vm293, %v2181, 0
        %2218 = vmatprep.subr.bf16.mxu0 0
        %2219 = vmatpush1.bf16.msra.mxu0 0
        %2220 = vmatprep.subr.bf16.mxu0 0
        %2221 = vmatpush1.bf16.msra.mxu0 0
        %2222 = vmatprep.subr.bf16.mxu0 0
        %2223 = vmatpush1.bf16.msra.mxu0 0
        %2224 = vmatprep.subr.bf16.mxu0 0
        %2225 = vmatpush1.bf16.msra.mxu0 0
        %2226 = vmatprep.subr.bf16.mxu0 0
        %2227 = vmatpush1.bf16.msra.mxu0 0
        %2228 = vmatprep.subr.bf16.mxu0 0
        %2229 = vmatpush1.bf16.msra.mxu0 0
        %2230 = vmatprep.subr.bf16.mxu0 0
        %2231 = vmatpush1.bf16.msra.mxu0 0
        %2232 = vmatprep.subr.bf16.mxu0 0
        %2233 = vmatpush1.bf16.msra.mxu0 %v2186
        %2234 = vmatprep.subr.bf16.mxu0 0
        %2235 = vmatpush2.bf16.msra.mxu0 0
        %2236 = vmatprep.subr.bf16.mxu0 0
        %2237 = vmatpush2.bf16.msra.mxu0 0
        %2238 = vmatprep.subr.bf16.mxu0 0
        %2239 = vmatpush2.bf16.msra.mxu0 0
        %2240 = vmatprep.subr.bf16.mxu0 0
        %2241 = vmatpush2.bf16.msra.mxu0 0
        %2242 = vmatprep.subr.bf16.mxu0 0
        %2243 = vmatpush2.bf16.msra.mxu0 0
        %2244 = vmatprep.subr.bf16.mxu0 0
        %2245 = vmatpush2.bf16.msra.mxu0 0
        %2246 = vmatprep.subr.bf16.mxu0 0
        %2247 = vmatpush2.bf16.msra.mxu0 0
        %2248 = vmatprep.subr.bf16.mxu0 0
        %2249 = vmatpush2.bf16.msra.mxu0 0
        %2250 = vmatprep.mubr.bf16.mxu0 0
        %2251 = vmatmul.mubr.bf16.gmra.mxu0 %v2189
        %v2252 = vpop.f32.mrf.mxu0
        %v2253 = vadd.f32 0.0, %v2252
        %v2254 = vpop.f32.mrf.mxu0
        %v2255 = vpop.f32.mrf.mxu0
        %v2256 = vadd.f32 0.0, %v2255
        %v2257 = vpop.f32.mrf.mxu0
        %2258 = vmatprep.mubr.bf16.mxu0 0
        %2259 = vmatmul.mubr.bf16.gmra.mxu0 %v2192
        %v2260 = vpop.f32.mrf.mxu0
        %v2261 = vadd.f32 0.0, %v2260
        %v2262 = vpop.f32.mrf.mxu0
        %v2263 = vpop.f32.mrf.mxu0
        %v2264 = vadd.f32 0.0, %v2263
        %v2265 = vpop.f32.mrf.mxu0
        %2266 = vmatprep.mubr.bf16.mxu0 0
        %2267 = vmatmul.mubr.bf16.gmra.mxu0 %v2195
        %v2268 = vpop.f32.mrf.mxu0
        %v2269 = vadd.f32 0.0, %v2268
        %v2270 = vpop.f32.mrf.mxu0
        %v2271 = vpop.f32.mrf.mxu0
        %v2272 = vadd.f32 0.0, %v2271
        %v2273 = vpop.f32.mrf.mxu0
        %2274 = vmatprep.mubr.bf16.mxu0 0
        %2275 = vmatmul.mubr.bf16.gmra.mxu0 %v2198
        %v2276 = vpop.f32.mrf.mxu0
        %v2277 = vadd.f32 0.0, %v2276
        %v2278 = vpop.f32.mrf.mxu0
        %v2279 = vpop.f32.mrf.mxu0
        %v2280 = vadd.f32 0.0, %v2279
        %v2281 = vpop.f32.mrf.mxu0
        %2282 = vmatprep.mubr.bf16.mxu0 0
        %2283 = vmatmul.mubr.bf16.gmra.mxu0 %v2201
        %v2284 = vpop.f32.mrf.mxu0
        %v2285 = vadd.f32 0.0, %v2284
        %v2286 = vpop.f32.mrf.mxu0
        %v2287 = vpop.f32.mrf.mxu0
        %v2288 = vadd.f32 0.0, %v2287
        %v2289 = vpop.f32.mrf.mxu0
        %2290 = vmatprep.mubr.bf16.mxu0 0
        %2291 = vmatmul.mubr.bf16.gmra.mxu0 %v2204
        %v2292 = vpop.f32.mrf.mxu0
        %v2293 = vadd.f32 0.0, %v2292
        %v2294 = vpop.f32.mrf.mxu0
        %v2295 = vpop.f32.mrf.mxu0
        %v2296 = vadd.f32 0.0, %v2295
        %v2297 = vpop.f32.mrf.mxu0
        %2298 = vmatprep.mubr.bf16.mxu0 0
        %2299 = vmatmul.mubr.bf16.gmra.mxu0 %v2207
        %v2300 = vpop.f32.mrf.mxu0
        %v2301 = vadd.f32 0.0, %v2300
        %v2302 = vpop.f32.mrf.mxu0
        %v2303 = vpop.f32.mrf.mxu0
        %v2304 = vadd.f32 0.0, %v2303
        %v2305 = vpop.f32.mrf.mxu0
        %2306 = vmatprep.mubr.bf16.mxu0 0
        %2307 = vmatmul.mubr.bf16.gmra.mxu0 %v2210
        %v2308 = vpop.f32.mrf.mxu0
        %v2309 = vadd.f32 0.0, %v2308
        %v2310 = vpop.f32.mrf.mxu0
        %v2311 = vpop.f32.mrf.mxu0
        %v2312 = vadd.f32 0.0, %v2311
        %v2313 = vpop.f32.mrf.mxu0
        %2314 = vmatprep.mubr.bf16.mxu0 0
        %2315 = vmatmul.mubr.bf16.gmra.mxu0 %v2213
        %v2316 = vpop.f32.mrf.mxu0
        %v2317 = vadd.f32 0.0, %v2316
        %v2318 = vpop.f32.mrf.mxu0
        %v2319 = vpop.f32.mrf.mxu0
        %v2320 = vadd.f32 0.0, %v2319
        %v2321 = vpop.f32.mrf.mxu0
        %2322 = vmatprep.mubr.bf16.mxu0 0
        %2323 = vmatmul.mubr.bf16.gmra.mxu0 %v2216
        %v2324 = vpop.f32.mrf.mxu0
        %v2325 = vadd.f32 0.0, %v2324
        %v2326 = vpop.f32.mrf.mxu0
        %v2327 = vpop.f32.mrf.mxu0
        %v2328 = vadd.f32 0.0, %v2327
        %v2329 = vpop.f32.mrf.mxu0
        %2330 = vdwg.mxu0
        %v2331 = vmul.f32 %v2253, %v2269
        %v2332 = vmul.f32 %v2256, %v2272
        %v2333 = vmul.f32 %v2261, %v2277
        %v2334 = vmul.f32 %v2264, %v2280
        %v2335 = vmul.f32 %v2253, %v2253
        %v2336 = vmul.f32 %v2256, %v2256
        %v2337 = vmul.f32 %v2261, %v2261
        %v2338 = vmul.f32 %v2264, %v2264
        %v2339 = vmul.f32 %v2269, %v2269
        %v2340 = vmul.f32 %v2272, %v2272
        %v2341 = vmul.f32 %v2277, %v2277
        %v2342 = vmul.f32 %v2280, %v2280
        %v2343 = vmul.f32 %v2331, 2.0
        %v2344 = vmul.f32 %v2332, 2.0
        %v2345 = vmul.f32 %v2333, 2.0
        %v2346 = vmul.f32 %v2334, 2.0
        %v2347 = vadd.f32 %v2343, 0.0001
        %v2348 = vadd.f32 %v2344, 0.0001
        %v2349 = vadd.f32 %v2345, 0.0001
        %v2350 = vadd.f32 %v2346, 0.0001
        %v2351 = vsub.f32 %v2317, %v2331
        %v2352 = vsub.f32 %v2320, %v2332
        %v2353 = vsub.f32 %v2325, %v2333
        %v2354 = vsub.f32 %v2328, %v2334
        %v2355 = vmul.f32 %v2351, 2.0
        %v2356 = vmul.f32 %v2352, 2.0
        %v2357 = vmul.f32 %v2353, 2.0
        %v2358 = vmul.f32 %v2354, 2.0
        %v2359 = vadd.f32 %v2355, 0.0009
        %v2360 = vadd.f32 %v2356, 0.0009
        %v2361 = vadd.f32 %v2357, 0.0009
        %v2362 = vadd.f32 %v2358, 0.0009
        %v2363 = vmul.f32 %v2347, %v2359
        %v2364 = vmul.f32 %v2348, %v2360
        %v2365 = vmul.f32 %v2349, %v2361
        %v2366 = vmul.f32 %v2350, %v2362
        %v2367 = vadd.f32 %v2335, %v2339
        %v2368 = vadd.f32 %v2336, %v2340
        %v2369 = vadd.f32 %v2337, %v2341
        %v2370 = vadd.f32 %v2338, %v2342
        %v2371 = vadd.f32 %v2367, 0.0001
        %v2372 = vadd.f32 %v2368, 0.0001
        %v2373 = vadd.f32 %v2369, 0.0001
        %v2374 = vadd.f32 %v2370, 0.0001
        %v2375 = vsub.f32 %v2285, %v2335
        %v2376 = vsub.f32 %v2288, %v2336
        %v2377 = vsub.f32 %v2293, %v2337
        %v2378 = vsub.f32 %v2296, %v2338
        %v2379 = vsub.f32 %v2301, %v2339
        %v2380 = vsub.f32 %v2304, %v2340
        %v2381 = vsub.f32 %v2309, %v2341
        %v2382 = vsub.f32 %v2312, %v2342
        %v2383 = vadd.f32 %v2375, %v2379
        %v2384 = vadd.f32 %v2376, %v2380
        %v2385 = vadd.f32 %v2377, %v2381
        %v2386 = vadd.f32 %v2378, %v2382
        %v2387 = vadd.f32 %v2383, 0.0009
        %v2388 = vadd.f32 %v2384, 0.0009
        %v2389 = vadd.f32 %v2385, 0.0009
        %v2390 = vadd.f32 %v2386, 0.0009
        %v2391 = vmul.f32 %v2371, %v2387
        %v2392 = vmul.f32 %v2372, %v2388
        %v2393 = vmul.f32 %v2373, %v2389
        %v2394 = vmul.f32 %v2374, %v2390
        %v2395 = vrcp.pop %v2391
        %v2396 = vrcp.pop %v2392
        %v2397 = vrcp.pop %v2393
        %v2398 = vrcp.pop %v2394
        %v2399 = vmul.f32 %v2391, %v2395
        %v2400 = vmul.f32 %v2392, %v2396
        %v2401 = vmul.f32 %v2393, %v2397
        %v2402 = vmul.f32 %v2394, %v2398
        %v2403 = vsub.f32 2.0, %v2399
        %v2404 = vsub.f32 2.0, %v2400
        %v2405 = vsub.f32 2.0, %v2401
        %v2406 = vsub.f32 2.0, %v2402
        %v2407 = vmul.f32 %v2395, %v2403
        %v2408 = vmul.f32 %v2396, %v2404
        %v2409 = vmul.f32 %v2397, %v2405
        %v2410 = vmul.f32 %v2398, %v2406
        %v2411 = vmul.f32 %v2363, %v2407
        %v2412 = vmul.f32 %v2364, %v2408
        %v2413 = vmul.f32 %v2365, %v2409
        %v2414 = vmul.f32 %v2366, %v2410
        %v2415 = vld [vmem:[%s3] sm:$0xff]
        %v2416 = vmul.f32 %v2411, %v2415
        %v2417 = vmul.f32 %v2412, %v2415
        %v2418 = vmul.f32 %v2413, %v2415
        %v2419 = vmul.f32 %v2414, %v2415
        %v2420 = vadd.f32 %v2416, %v2417
        %v2421 = vadd.f32 %v2420, %v2418
        %v2422 = vadd.f32 %v2421, %v2419
        %2423 = vadd.xlane.f32.xlu0 %v2422
        %v2424 = vpop.xlane.xlu0 %2423
        %v2425 = vrot.slane %v2424, 4
        %v2426 = vadd.f32 %v2424, %v2425
        %v2427 = vrot.slane %v2426, 2
        %v2428 = vadd.f32 %v2426, %v2427
        %v2429 = vrot.slane %v2428, 1
        %v2430 = vadd.f32 %v2428, %v2429
        %s2431 = vtos %v2430
        %v2432 = vlaneseq
        %v2433 = vshrl.u32 %v2432, 7
        %v2434 = vlaneseq
        %v2435 = vand.u32 %v2434, 127
        %vm2436 = vcmp.eq.s32.totalorder %v2433, 0
        %vm2437 = vcmp.eq.s32.totalorder %v2435, 0
        %vm2438 = vmand %vm2436, %vm2437
        %vm2439 = vcmp.eq.s32.totalorder %v2435, 1
        %vm2440 = vmand %vm2436, %vm2439
        %v2441 = vstv %s2431
        %v2442 = vsel %vm2440, %v2441, 0.0
        %v2443 = vstv %s317
        %v2444 = vsel %vm2438, %v2443, %v2442
        %2445 = vst [vmem:[%s259] sm:$0xff] %v2444
        %p2446 = scmp.lt.s32.totalorder %s21, 1
        %s2447 = scalar_select %p2446, %s21, 1
        %s2448 = smul.addr %s2447, 8
        %s2449 = scalar_lea.vmem %s4, %s2448
        // Predicated region
        $region45: #{combined_mse_ssim_loss.1} parent=35 // pred_check
          %p2450 = pneg %p133
        $region46: #{combined_mse_ssim_loss.1} parent=35 // pred_check_branch
          %2452 = sbr.rel (%p2450) target = $region48
        $region47: #{combined_mse_ssim_loss.1} parent=35 // pred_region
          _
        $region48: #{combined_mse_ssim_loss.1} parent=35 // pred_fallthru
          _
      $region36: #{combined_mse_ssim_loss.1} parent=5 // pred_fallthru
        _
      %p2453 = scmp.le.s32.totalorder 2, %s16
      // Predicated region
      $region49: #{combined_mse_ssim_loss.1} parent=5 // pred_check
        %p2454 = pneg %p2453
      $region50: #{combined_mse_ssim_loss.1} parent=5 // pred_check_branch
        %2456 = sbr.rel (%p2454) target = $region52
      $region51: #{combined_mse_ssim_loss.1} parent=5 // pred_region
        %s2457 = ssub.s32 %s16, 2
        // Predicated region
        $region53: #{combined_mse_ssim_loss.1} parent=51 // pred_check
          %p2458 = pneg %p139
        $region54: #{combined_mse_ssim_loss.1} parent=51 // pred_check_branch
          %2460 = sbr.rel (%p2458) target = $region56
        $region55: #{combined_mse_ssim_loss.1} parent=51 // pred_region
          %p2461 = scmp.lt.s32.totalorder %s22, 1
          %s2462 = scalar_select %p2461, %s22, 1
          %s2463 = smul.addr %s2462, 8
          %s2464 = scalar_lea.vmem %s4, %s2463
        $region56: #{combined_mse_ssim_loss.1} parent=51 // pred_fallthru
          _
      $region52: #{combined_mse_ssim_loss.1} parent=5 // pred_fallthru
        _
    $region6: #{combined_mse_ssim_loss.1} parent=1 // loop_footer
      %s20 = sadd.s32 1, %s16
    $region7: #{combined_mse_ssim_loss.1} parent=1 // loop_footer_branch
      %15 = sbr.rel target = $region3
    $region8: #{combined_mse_ssim_loss.1} parent=1 // loop_exit
      _
    %2465 = vsyncpa [#allocation4], 1
    %s2466 = scalar_lea.sflag [#allocation4], 1
    %2467 = vsyncpa %s2466, 1
    %2468 = vsyncpa [#allocation6], 1
    %s2469 = scalar_lea.sflag [#allocation6], 1
    %2470 = vsyncpa %s2469, 1

</llo_original>
